<compile_context>
chip_gen: v7x
topology: tpu7x:2x2x1
jax: 0.10.0
libtpu: 0.0.40
codegen_flags: <defaults>
</compile_context>

<pallas_src>
import numpy as np
import jax
import jax.numpy as jnp
from jax.experimental import pallas as pl
from jax.experimental.pallas import tpu as pltpu


K_PAD = 128     # MLP input dim (42) zero-padded to a lane-aligned 128
TN = 512        # output-column tile for the dominant last layer (3072 cols)


def _round_up(x, m):
    return (x + m - 1) // m * m


def _leaky_relu_02(h):
    return jnp.where(h >= 0, h, 0.2 * h)


# ----------------------------- Pallas kernel --------------------------------

def genlin_mlp_kernel(x_ref,
                      w1_ref, b1_ref,
                      w2_ref, b2_ref,
                      w3_ref, b3_ref,
                      w4_ref, b4_ref,
                      o_ref,
                      h3_ref):
    """Grid = (batch tiles i, layer-4 output-column tiles j).

    x tile (TM, K_PAD) bf16; W1-W3 full bf16 blocks (VMEM-resident across the
    grid, constant index_map); W4 streamed as (512, TN) bf16 slabs over j.
    Layers 1-3 run once per batch tile (j == 0) into the bf16 scratch h3_ref;
    every j-step then runs only the layer-4 slab matmul.  All dots accumulate
    in f32 on the MXU; the final store is bf16 to halve HBM writeback.
    """
    j = pl.program_id(1)

    @pl.when(j == 0)
    def _():
        h = jnp.dot(x_ref[...], w1_ref[...],
                    preferred_element_type=jnp.float32) + b1_ref[...]
        h = _leaky_relu_02(h).astype(jnp.bfloat16)

        h = jnp.dot(h, w2_ref[...],
                    preferred_element_type=jnp.float32) + b2_ref[...]
        h = _leaky_relu_02(h).astype(jnp.bfloat16)

        h = jnp.dot(h, w3_ref[...],
                    preferred_element_type=jnp.float32) + b3_ref[...]
        h3_ref[...] = _leaky_relu_02(h).astype(jnp.bfloat16)

    out = jnp.dot(h3_ref[...], w4_ref[...],
                  preferred_element_type=jnp.float32) + b4_ref[...]
    o_ref[...] = out.astype(o_ref.dtype)          # bf16 writeback


def genlin_mlp(x, packed_params, *, out_dim=None, tm_max=512):
    """Fused 4-layer MLP.

    x: (B, inp_dim) f32 (inp_dim <= K_PAD; zero-padded + cast to bf16 here).
    packed_params: [(W_bf16, b_f32), ...]; W1 zero-padded to K_PAD rows,
    W4/b4 zero-padded to a multiple of TN output columns.
    Returns (B, out_dim) f32.
    """
    (w1, b1), (w2, b2), (w3, b3), (w4, b4) = packed_params
    B, inp_dim = x.shape
    k_pad = w1.shape[0]
    d3 = w4.shape[0]                      # 16 * ngf
    out_pad = w4.shape[1]
    if out_dim is None:
        out_dim = out_pad
    assert out_pad % TN == 0, (out_pad, TN)

    # Batch tiling that avoids gross over-padding: pick the number of tiles
    # first, then the smallest sublane-aligned tile that covers B.
    n_tiles = int(pl.cdiv(B, tm_max))
    TM = _round_up(int(pl.cdiv(B, n_tiles)), 8)
    B_pad = n_tiles * TM

    # Zero-padded bf16 input (W1's zero rows match the zero-padded columns).
    x_pad = jnp.zeros((B_pad, k_pad), jnp.bfloat16).at[:B, :inp_dim].set(
        x.astype(jnp.bfloat16))

    row_map = lambda i, j: (i, 0)      # x: tiled over batch, revisited over j
    const_map = lambda i, j: (0, 0)    # W1-W3 / b1-b3: VMEM-resident
    col_map = lambda i, j: (0, j)      # W4 / b4: tiled over output columns
    out_map = lambda i, j: (i, j)

    flops = (2 * B_pad * (k_pad * w1.shape[1]
                          + w2.shape[0] * w2.shape[1]
                          + w3.shape[0] * w3.shape[1])
             + 2 * B_pad * d3 * out_pad)
    bytes_accessed = (
        sum(int(np.prod(a.shape)) * a.dtype.itemsize
            for a in (w1, b1, w2, b2, w3, b3, w4, b4))
        + x_pad.size * x_pad.dtype.itemsize
        + B_pad * out_pad * 2)                       # bf16 output

    out = pl.pallas_call(
        genlin_mlp_kernel,
        out_shape=jax.ShapeDtypeStruct((B_pad, out_pad), jnp.bfloat16),
        grid_spec=pltpu.PrefetchScalarGridSpec(
            num_scalar_prefetch=0,
            grid=(B_pad // TM, out_pad // TN),
            in_specs=[
                pl.BlockSpec((TM, k_pad), row_map),
                pl.BlockSpec(w1.shape, const_map), pl.BlockSpec(b1.shape, const_map),
                pl.BlockSpec(w2.shape, const_map), pl.BlockSpec(b2.shape, const_map),
                pl.BlockSpec(w3.shape, const_map), pl.BlockSpec(b3.shape, const_map),
                pl.BlockSpec((d3, TN), col_map), pl.BlockSpec((1, TN), col_map),
            ],
            out_specs=pl.BlockSpec((TM, TN), out_map),
            scratch_shapes=[pltpu.VMEM((TM, d3), jnp.bfloat16)],
        ),
        compiler_params=pltpu.CompilerParams(
            # Batch tiles are independent -> shard across megacore TCs; the
            # OUT axis carries the h3 scratch dependency -> sequential.
            dimension_semantics=("parallel", "arbitrary"),
            # Headroom above v5e's 16 MiB scoped default; working set is only
            # a few MB, well under v7x's 64 MiB physical VMEM per TC.
            vmem_limit_bytes=32 * 1024 * 1024,
        ),
        cost_estimate=pl.CostEstimate(
            flops=flops, transcendentals=0, bytes_accessed=bytes_accessed),
    )(x_pad, w1, b1, w2, b2, w3, b3, w4, b4)

    return out[:B, :out_dim].astype(jnp.float32)


# --------------------------- Parameter construction --------------------------

def init_genlin_params(key, n_classes=10, latent_sz=32, ngf=32,
                       img_shape=(3, 32, 32)):
    """Deterministic synthetic f32 parameters matching GenLin's shapes.

    Linear weights are stored (in, out) so the kernel computes x @ W + b,
    mathematically identical to PyTorch's x @ W_pt.T + b.
    """
    inp_dim = latent_sz + n_classes
    out_dim = int(np.prod(img_shape))
    dims = [inp_dim, 4 * ngf, 8 * ngf, 16 * ngf, out_dim]

    keys = jax.random.split(key, 1 + 2 * 4)
    emb = jax.random.normal(keys[0], (n_classes, n_classes), jnp.float32)

    params = []
    for li in range(4):
        fan_in, fan_out = dims[li], dims[li + 1]
        bound = 1.0 / np.sqrt(fan_in)
        w = jax.random.uniform(keys[1 + 2 * li], (fan_in, fan_out),
                               jnp.float32, -bound, bound)
        b = jax.random.uniform(keys[2 + 2 * li], (1, fan_out),
                               jnp.float32, -bound, bound)
        params.append((w, b))
    return emb, params


def pack_genlin_params(params, k_pad=K_PAD, n_tile=TN):
    """Kernel-ready params: bf16 weights, f32 biases.

    W1 is zero-padded to k_pad input rows; W4/b4 are zero-padded to a multiple
    of n_tile output columns so the last layer can be column-tiled.
    """
    packed = []
    for li, (w, b) in enumerate(params):
        if li == 0 and w.shape[0] < k_pad:
            w = jnp.zeros((k_pad, w.shape[1]), w.dtype).at[:w.shape[0], :].set(w)
        if li == 3:
            out_pad = _round_up(w.shape[1], n_tile)
            if out_pad != w.shape[1]:
                w = jnp.zeros((w.shape[0], out_pad), w.dtype).at[:, :w.shape[1]].set(w)
                b = jnp.zeros((1, out_pad), b.dtype).at[:, :b.shape[1]].set(b)
        packed.append((w.astype(jnp.bfloat16), b.astype(jnp.float32)))
    return packed


# ------------------------------- Forward pass --------------------------------

def genlin_forward(key, ys, emb, packed_params, latent_sz=32, img_shape=(3, 32, 32)):
    B = ys.shape[0]
    out_dim = int(np.prod(img_shape))
    # get_inp: concat(normal noise, label embedding) -- kept in plain JAX.
    # TODO(synk): torch.normal's RNG stream has no in-kernel equivalent, so the
    # noise/embedding/concat glue stays outside the Pallas call.
    u_vec = jax.random.normal(key, (B, latent_sz), jnp.float32)
    y_vec = emb[ys]
    inp = jnp.concatenate([u_vec, y_vec], axis=-1)            # (B, latent+classes)

    x_gen = genlin_mlp(inp, packed_params, out_dim=out_dim)   # (B, prod(img_shape)) f32
    return x_gen.reshape(B, *img_shape)                       # NCHW


# Pure-JAX references for correctness checks.
def genlin_mlp_ref_bf16(x, params_f32):
    """Mirrors the kernel's bf16-weight / f32-accumulate arithmetic."""
    h = x.astype(jnp.bfloat16)
    for i, (w, b) in enumerate(params_f32):
        h = jnp.dot(h, w.astype(jnp.bfloat16),
                    preferred_element_type=jnp.float32) + b
        if i < 3:
            h = _leaky_relu_02(h).astype(jnp.bfloat16)
    return h


def genlin_mlp_ref_f32(x, params_f32):
    h = x
    for i, (w, b) in enumerate(params_f32):
        h = h @ w + b
        if i < 3:
            h = _leaky_relu_02(h)
    return h


if __name__ == "__main__":
    key = jax.random.PRNGKey(0)
    k_params, k_noise, k_labels = jax.random.split(key, 3)

    n_classes, latent_sz, ngf = 10, 32, 32
    img_shape = (3, 32, 32)
    B = 8

    emb, params_f32 = init_genlin_params(k_params, n_classes, latent_sz, ngf, img_shape)
    packed = pack_genlin_params(params_f32)
    ys = jax.random.randint(k_labels, (B,), 0, n_classes)

    x_gen = genlin_forward(k_noise, ys, emb, packed, latent_sz, img_shape)
    x_gen = jax.block_until_ready(x_gen)
    assert x_gen.shape == (B, *img_shape), x_gen.shape

    # Correctness: rebuild the same input and compare.
    u_vec = jax.random.normal(k_noise, (B, latent_sz), jnp.float32)
    inp = jnp.concatenate([u_vec, emb[ys]], axis=-1)

    # (1) tight check against a reference with matching bf16 quantization
    #     (including the kernel's final bf16 store rounding).
    ref_bf16 = genlin_mlp_ref_bf16(inp, params_f32)
    ref_bf16 = ref_bf16.astype(jnp.bfloat16).astype(jnp.float32).reshape(B, *img_shape)
    np.testing.assert_allclose(np.asarray(x_gen), np.asarray(ref_bf16),
                               rtol=2e-2, atol=2e-2)

    # (2) loose check against the full-f32 semantics of the PyTorch module.
    ref_f32 = genlin_mlp_ref_f32(inp, params_f32).reshape(B, *img_shape)
    np.testing.assert_allclose(np.asarray(x_gen), np.asarray(ref_f32),
                               rtol=1e-1, atol=5e-2)

    print("KERNEL_OK")
</pallas_src>

<mosaic_0001>
module attributes {stable_mosaic.version = 11 : i64} {
  func.func @genlin_mlp_kernel(%arg0: i32, %arg1: i32, %arg2: memref<8x128xbf16, #tpu.memory_space<vmem>>, %arg3: memref<128x128xbf16, #tpu.memory_space<vmem>>, %arg4: memref<1x128xf32, #tpu.memory_space<vmem>>, %arg5: memref<128x256xbf16, #tpu.memory_space<vmem>>, %arg6: memref<1x256xf32, #tpu.memory_space<vmem>>, %arg7: memref<256x512xbf16, #tpu.memory_space<vmem>>, %arg8: memref<1x512xf32, #tpu.memory_space<vmem>>, %arg9: memref<512x512xbf16, #tpu.memory_space<vmem>>, %arg10: memref<1x512xf32, #tpu.memory_space<vmem>>, %arg11: memref<8x512xbf16, #tpu.memory_space<vmem>>, %arg12: memref<8x512xbf16, #tpu.memory_space<vmem>>) attributes {dimension_semantics = [#tpu.dimension_semantics<parallel>, #tpu.dimension_semantics<arbitrary>], iteration_bounds = array<i64: 1, 6>, scalar_prefetch = 0 : i64, scratch_operands = 1 : i64, tpu.core_type = #tpu.core_type<tc>, window_params = [{transform_indices = @transform_0, window_bounds = array<i64: 8, 128>}, {pipeline_mode = #tpu.pipeline_mode<synchronous>, transform_indices = @transform_1, window_bounds = array<i64: 128, 128>}, {pipeline_mode = #tpu.pipeline_mode<synchronous>, transform_indices = @transform_2, window_bounds = array<i64: 1, 128>}, {pipeline_mode = #tpu.pipeline_mode<synchronous>, transform_indices = @transform_3, window_bounds = array<i64: 128, 256>}, {pipeline_mode = #tpu.pipeline_mode<synchronous>, transform_indices = @transform_4, window_bounds = array<i64: 1, 256>}, {pipeline_mode = #tpu.pipeline_mode<synchronous>, transform_indices = @transform_5, window_bounds = array<i64: 256, 512>}, {pipeline_mode = #tpu.pipeline_mode<synchronous>, transform_indices = @transform_6, window_bounds = array<i64: 1, 512>}, {transform_indices = @transform_7, window_bounds = array<i64: 512, 512>}, {transform_indices = @transform_8, window_bounds = array<i64: 1, 512>}, {transform_indices = @transform_9, window_bounds = array<i64: 8, 512>}]} {
    %c0_i32 = arith.constant 0 : i32
    %0 = arith.cmpi eq, %arg1, %c0_i32 : i32
    %1 = arith.extui %0 : i1 to i32
    %c0_i32_0 = arith.constant 0 : i32
    %2 = arith.cmpi ne, %1, %c0_i32_0 : i32
    scf.if %2 {
      %c0_8 = arith.constant 0 : index
      %c0_9 = arith.constant 0 : index
      %11 = vector.load %arg2[%c0_8, %c0_9] : memref<8x128xbf16, #tpu.memory_space<vmem>>, vector<8x128xbf16>
      %c0_10 = arith.constant 0 : index
      %c0_11 = arith.constant 0 : index
      %12 = vector.load %arg3[%c0_10, %c0_11] : memref<128x128xbf16, #tpu.memory_space<vmem>>, vector<128x128xbf16>
      %cst_12 = arith.constant dense<0.000000e+00> : vector<8x128xf32>
      %13 = tpu.matmul %11, %12, %cst_12 {dimension_numbers = #tpu.dot_dimension_numbers<[1], [0], [0], [1], [0, 0, 1, 1], [], []>} : vector<8x128xbf16>, vector<128x128xbf16>, vector<8x128xf32> -> vector<8x128xf32>
      %c0_13 = arith.constant 0 : index
      %c0_14 = arith.constant 0 : index
      %14 = vector.load %arg4[%c0_13, %c0_14] : memref<1x128xf32, #tpu.memory_space<vmem>>, vector<1x128xf32>
      %15 = vector.broadcast %14 : vector<1x128xf32> to vector<8x128xf32>
      %16 = arith.addf %13, %15 : vector<8x128xf32>
      %cst_15 = arith.constant 0.000000e+00 : f32
      %17 = vector.broadcast %cst_15 : f32 to vector<8x128xf32>
      %18 = arith.cmpf oge, %16, %17 : vector<8x128xf32>
      %cst_16 = arith.constant 2.000000e-01 : f32
      %19 = vector.broadcast %cst_16 : f32 to vector<8x128xf32>
      %20 = arith.mulf %19, %16 : vector<8x128xf32>
      %21 = arith.select %18, %16, %20 : vector<8x128xi1>, vector<8x128xf32>
      %22 = arith.truncf %21 : vector<8x128xf32> to vector<8x128xbf16>
      %c0_17 = arith.constant 0 : index
      %c0_18 = arith.constant 0 : index
      %23 = vector.load %arg5[%c0_17, %c0_18] : memref<128x256xbf16, #tpu.memory_space<vmem>>, vector<128x256xbf16>
      %cst_19 = arith.constant dense<0.000000e+00> : vector<8x256xf32>
      %24 = tpu.matmul %22, %23, %cst_19 {dimension_numbers = #tpu.dot_dimension_numbers<[1], [0], [0], [1], [0, 0, 1, 1], [], []>} : vector<8x128xbf16>, vector<128x256xbf16>, vector<8x256xf32> -> vector<8x256xf32>
      %c0_20 = arith.constant 0 : index
      %c0_21 = arith.constant 0 : index
      %25 = vector.load %arg6[%c0_20, %c0_21] : memref<1x256xf32, #tpu.memory_space<vmem>>, vector<1x256xf32>
      %26 = vector.broadcast %25 : vector<1x256xf32> to vector<8x256xf32>
      %27 = arith.addf %24, %26 : vector<8x256xf32>
      %cst_22 = arith.constant 0.000000e+00 : f32
      %28 = vector.broadcast %cst_22 : f32 to vector<8x256xf32>
      %29 = arith.cmpf oge, %27, %28 : vector<8x256xf32>
      %cst_23 = arith.constant 2.000000e-01 : f32
      %30 = vector.broadcast %cst_23 : f32 to vector<8x256xf32>
      %31 = arith.mulf %30, %27 : vector<8x256xf32>
      %32 = arith.select %29, %27, %31 : vector<8x256xi1>, vector<8x256xf32>
      %33 = arith.truncf %32 : vector<8x256xf32> to vector<8x256xbf16>
      %c0_24 = arith.constant 0 : index
      %c0_25 = arith.constant 0 : index
      %34 = vector.load %arg7[%c0_24, %c0_25] : memref<256x512xbf16, #tpu.memory_space<vmem>>, vector<256x512xbf16>
      %cst_26 = arith.constant dense<0.000000e+00> : vector<8x512xf32>
      %35 = tpu.matmul %33, %34, %cst_26 {dimension_numbers = #tpu.dot_dimension_numbers<[1], [0], [0], [1], [0, 0, 1, 1], [], []>} : vector<8x256xbf16>, vector<256x512xbf16>, vector<8x512xf32> -> vector<8x512xf32>
      %c0_27 = arith.constant 0 : index
      %c0_28 = arith.constant 0 : index
      %36 = vector.load %arg8[%c0_27, %c0_28] : memref<1x512xf32, #tpu.memory_space<vmem>>, vector<1x512xf32>
      %37 = vector.broadcast %36 : vector<1x512xf32> to vector<8x512xf32>
      %38 = arith.addf %35, %37 : vector<8x512xf32>
      %cst_29 = arith.constant 0.000000e+00 : f32
      %39 = vector.broadcast %cst_29 : f32 to vector<8x512xf32>
      %40 = arith.cmpf oge, %38, %39 : vector<8x512xf32>
      %cst_30 = arith.constant 2.000000e-01 : f32
      %41 = vector.broadcast %cst_30 : f32 to vector<8x512xf32>
      %42 = arith.mulf %41, %38 : vector<8x512xf32>
      %43 = arith.select %40, %38, %42 : vector<8x512xi1>, vector<8x512xf32>
      %44 = arith.truncf %43 : vector<8x512xf32> to vector<8x512xbf16>
      %c0_31 = arith.constant 0 : index
      %c0_32 = arith.constant 0 : index
      %45 = vector.load %arg12[%c0_31, %c0_32] : memref<8x512xbf16, #tpu.memory_space<vmem>>, vector<8x512xbf16>
      tpu.vector_store %arg12[%c0_31, %c0_32], %44 {strides = array<i32>} : memref<8x512xbf16, #tpu.memory_space<vmem>>, vector<8x512xbf16>,
    } else {
    }
    %c0 = arith.constant 0 : index
    %c0_1 = arith.constant 0 : index
    %3 = vector.load %arg12[%c0, %c0_1] : memref<8x512xbf16, #tpu.memory_space<vmem>>, vector<8x512xbf16>
    %c0_2 = arith.constant 0 : index
    %c0_3 = arith.constant 0 : index
    %4 = vector.load %arg9[%c0_2, %c0_3] : memref<512x512xbf16, #tpu.memory_space<vmem>>, vector<512x512xbf16>
    %cst = arith.constant dense<0.000000e+00> : vector<8x512xf32>
    %5 = tpu.matmul %3, %4, %cst {dimension_numbers = #tpu.dot_dimension_numbers<[1], [0], [0], [1], [0, 0, 1, 1], [], []>} : vector<8x512xbf16>, vector<512x512xbf16>, vector<8x512xf32> -> vector<8x512xf32>
    %c0_4 = arith.constant 0 : index
    %c0_5 = arith.constant 0 : index
    %6 = vector.load %arg10[%c0_4, %c0_5] : memref<1x512xf32, #tpu.memory_space<vmem>>, vector<1x512xf32>
    %7 = vector.broadcast %6 : vector<1x512xf32> to vector<8x512xf32>
    %8 = arith.addf %5, %7 : vector<8x512xf32>
    %9 = arith.truncf %8 : vector<8x512xf32> to vector<8x512xbf16>
    %c0_6 = arith.constant 0 : index
    %c0_7 = arith.constant 0 : index
    %10 = vector.load %arg11[%c0_6, %c0_7] : memref<8x512xbf16, #tpu.memory_space<vmem>>, vector<8x512xbf16>
    tpu.vector_store %arg11[%c0_6, %c0_7], %9 {strides = array<i32>} : memref<8x512xbf16, #tpu.memory_space<vmem>>, vector<8x512xbf16>,
    return
  }
  func.func @transform_0(%arg0: i32, %arg1: i32) -> (i32, i32) {
    %c0_i32 = arith.constant 0 : i32
    %c0_i32_0 = arith.constant 0 : i32
    return %arg0, %c0_i32 : i32, i32
  }
  func.func @transform_1(%arg0: i32, %arg1: i32) -> (i32, i32) {
    %c0_i32 = arith.constant 0 : i32
    %c0_i32_0 = arith.constant 0 : i32
    %c0_i32_1 = arith.constant 0 : i32
    return %c0_i32, %c0_i32_0 : i32, i32
  }
  func.func @transform_2(%arg0: i32, %arg1: i32) -> (i32, i32) {
    %c0_i32 = arith.constant 0 : i32
    %c0_i32_0 = arith.constant 0 : i32
    %c0_i32_1 = arith.constant 0 : i32
    return %c0_i32, %c0_i32_0 : i32, i32
  }
  func.func @transform_3(%arg0: i32, %arg1: i32) -> (i32, i32) {
    %c0_i32 = arith.constant 0 : i32
    %c0_i32_0 = arith.constant 0 : i32
    %c0_i32_1 = arith.constant 0 : i32
    return %c0_i32, %c0_i32_0 : i32, i32
  }
  func.func @transform_4(%arg0: i32, %arg1: i32) -> (i32, i32) {
    %c0_i32 = arith.constant 0 : i32
    %c0_i32_0 = arith.constant 0 : i32
    %c0_i32_1 = arith.constant 0 : i32
    return %c0_i32, %c0_i32_0 : i32, i32
  }
  func.func @transform_5(%arg0: i32, %arg1: i32) -> (i32, i32) {
    %c0_i32 = arith.constant 0 : i32
    %c0_i32_0 = arith.constant 0 : i32
    %c0_i32_1 = arith.constant 0 : i32
    return %c0_i32, %c0_i32_0 : i32, i32
  }
  func.func @transform_6(%arg0: i32, %arg1: i32) -> (i32, i32) {
    %c0_i32 = arith.constant 0 : i32
    %c0_i32_0 = arith.constant 0 : i32
    %c0_i32_1 = arith.constant 0 : i32
    return %c0_i32, %c0_i32_0 : i32, i32
  }
  func.func @transform_7(%arg0: i32, %arg1: i32) -> (i32, i32) {
    %c0_i32 = arith.constant 0 : i32
    %c0_i32_0 = arith.constant 0 : i32
    return %c0_i32, %arg1 : i32, i32
  }
  func.func @transform_8(%arg0: i32, %arg1: i32) -> (i32, i32) {
    %c0_i32 = arith.constant 0 : i32
    %c0_i32_0 = arith.constant 0 : i32
    return %c0_i32, %arg1 : i32, i32
  }
  func.func @transform_9(%arg0: i32, %arg1: i32) -> (i32, i32) {
    %c0_i32 = arith.constant 0 : i32
    return %arg0, %arg1 : i32, i32
  }
}

</mosaic_0001>

<llo_original>
// kernel: tpu_custom_call.1
$region0: #{tpu_custom_call.1}
  #allocation0 [shape = 'u32[]', space=smem, size = 0x4, offset = 0x4, fixed_abs, tag = 'smem constant byte address 0x4 - core index']
  #allocation1 [shape = 'u32[144,128]{1,0:T(1,128)}', space=vmem, size = 0x12000, scoped, tag = 'internal scratch']
  #allocation2 [shape = 'bf16[8,512]{1,0:T(8,128)(2,1)}', space=vmem, size = 0x2000, scoped, tag = 'scratch operand']
  %s0 = inlined_call_operand.hbm [shape: bf16[8,128], index: 0, kind: input, shape index: {}]
  %s1 = inlined_call_operand.hbm [shape: bf16[128,128], index: 1, kind: input, shape index: {}]
  %s2 = inlined_call_operand.hbm [shape: f32[1,128], index: 2, kind: input, shape index: {}]
  %s3 = inlined_call_operand.hbm [shape: bf16[128,256], index: 3, kind: input, shape index: {}]
  %s4 = inlined_call_operand.hbm [shape: f32[1,256], index: 4, kind: input, shape index: {}]
  %s5 = inlined_call_operand.hbm [shape: bf16[256,512], index: 5, kind: input, shape index: {}]
  %s6 = inlined_call_operand.hbm [shape: f32[1,512], index: 6, kind: input, shape index: {}]
  %s7 = inlined_call_operand.hbm [shape: bf16[512,3072], index: 7, kind: input, shape index: {}]
  %s8 = inlined_call_operand.hbm [shape: f32[1,3072], index: 8, kind: input, shape index: {}]
  %s9 = inlined_call_operand.hbm [shape: bf16[8,3072], index: 9, kind: output, shape index: {}]
  %s10 = sld [smem:[#allocation0]]
  $region109: #{tpu_custom_call.1} parent=0
    _
  %s12 = ssub.s32 1, %s10
  %s13 = scalar_select 0, %s12, %s10
  $region1: #{tpu_custom_call.1} parent=0
    #allocation3 [shape = 'u8[2048]{0}', space=vmem, size = 0x800, scoped, tag = 'input window, operand 0, single buffered']
    #allocation4 [shape = 's32[2]{0}', space=sflag, size = 0x8, scoped, tag = 'scoped memory for tpu_custom_call.1']
    #allocation5 [shape = 's32[2]{0}', space=sflag, size = 0x8, scoped, tag = 'scoped memory for tpu_custom_call.1']
    #allocation6 [shape = 'u8[32768]{0}', space=vmem, size = 0x8000, scoped, tag = 'input window, operand 1, single buffered']
    #allocation7 [shape = 's32[1]{0}', space=sflag, size = 0x4, scoped, tag = 'scoped memory for tpu_custom_call.1']
    #allocation8 [shape = 'u8[512]{0}', space=vmem, size = 0x400, scoped, tag = 'input window, operand 2, single buffered']
    #allocation9 [shape = 'u8[65536]{0}', space=vmem, size = 0x10000, scoped, tag = 'input window, operand 3, single buffered']
    #allocation10 [shape = 's32[1]{0}', space=sflag, size = 0x4, scoped, tag = 'scoped memory for tpu_custom_call.1']
    #allocation11 [shape = 'u8[1024]{0}', space=vmem, size = 0x400, scoped, tag = 'input window, operand 4, single buffered']
    #allocation12 [shape = 'u8[262144]{0}', space=vmem, size = 0x40000, scoped, tag = 'input window, operand 5, single buffered']
    #allocation13 [shape = 's32[1]{0}', space=sflag, size = 0x4, scoped, tag = 'scoped memory for tpu_custom_call.1']
    #allocation14 [shape = 'u8[2048]{0}', space=vmem, size = 0x800, scoped, tag = 'input window, operand 6, single buffered']
    #allocation15 [shape = 'u8[1048576]{0}', space=vmem, size = 0x100000, scoped, tag = 'input window, operand 7']
    #allocation16 [shape = 's32[2]{0}', space=sflag, size = 0x8, scoped, tag = 'scoped memory for tpu_custom_call.1']
    #allocation17 [shape = 'u8[4096]{0}', space=vmem, size = 0x1000, scoped, tag = 'input window, operand 8']
    #allocation18 [shape = 'u8[16384]{0}', space=vmem, size = 0x4000, scoped, tag = 'output window, operand 0']
    %14 = vsyncpa [#allocation4], 0
    %15 = vsyncpa [#allocation7], 0
    %16 = vsyncpa [#allocation10], 0
    %17 = vsyncpa [#allocation13], 0
    %18 = vsyncpa [#allocation16], 0
    %s19 = scalar_lea.sflag [#allocation16], 1
    %20 = vsyncpa %s19, 0
    %21 = vsyncpa [#allocation5], 0
    %s22 = scalar_lea.sflag [#allocation5], 1
    %23 = vsyncpa %s22, 0
    loop: start=0, step=1, limit=8
    $region2: #{tpu_custom_call.1} parent=1 // loop_pre_header
      _
    $region3: #{tpu_custom_call.1} parent=1 // loop_header
      %s25 = sphi 0, %s29
      %p26 = scmp.ge.s32.totalorder %s25, 8
      %s32 = sphi 0, %s44
      %s33 = sphi 0, %s40
      %s34 = sphi 0, %s32
      %s35 = sphi 0, %s33
      %s36 = sphi 0, %s34
      %s37 = sphi 0, %s35
      %s47 = sphi 0, %s49
      %s50 = sphi 0, %s47
      %s51 = sphi 0, %s50
      %s67 = sphi 0, %s51
      %s71 = sphi 0, %s71
      %s73 = sphi 0, %s71
      %s74 = sphi 0, %s73
      %s88 = sphi 0, %s74
      %s92 = sphi 0, %s92
      %s94 = sphi 0, %s92
      %s95 = sphi 0, %s94
      %s109 = sphi 0, %s95
      %s113 = sphi 0, %s113
      %s115 = sphi 0, %s113
      %s116 = sphi 0, %s115
      %s130 = sphi 0, %s116
      %s134 = sphi 0, %s134
      %s136 = sphi 0, %s134
      %s137 = sphi 0, %s136
      %s151 = sphi 0, %s137
      %s155 = sphi 0, %s155
      %s157 = sphi 0, %s155
      %s158 = sphi 0, %s157
      %s172 = sphi 0, %s158
      %s176 = sphi 0, %s176
      %s178 = sphi 0, %s176
      %s179 = sphi 0, %s178
      %s193 = sphi 0, %s179
      %s199 = sphi 0, %s201
      %s202 = sphi 0, %s199
      %s203 = sphi 0, %s202
      %s219 = sphi 0, %s203
      %s225 = sphi 0, %s227
      %s228 = sphi 0, %s225
      %s229 = sphi 0, %s228
      %s245 = sphi 0, %s229
      %s253 = sphi 0, %s255
      %s256 = sphi 0, %s253
      %s257 = sphi 0, %s256
      %s273 = sphi 0, %s257
    $region4: #{tpu_custom_call.1} parent=1 // loop_header_branch
      %28 = sbr.rel (%p26) target = $region8
    $region5: #{tpu_custom_call.1} parent=1 // loop_body
      %s30 = ssub.s32 %s25, 1
      %s31 = ssub.s32 %s25, 2
      %s38 = sadd.s32 1, %s33
      %p39 = scmp.ge.s32.totalorder %s38, 6
      %s40 = scalar_select %p39, 0, %s38
      %s41 = sadd.s32 1, %s32
      %s42 = scalar_select %p39, %s41, %s32
      %p43 = scmp.ge.s32.totalorder %s42, 1
      %s44 = scalar_select %p43, 0, %s42
      %s45 = ssub.s32 %s32, %s44
      %p46 = scmp.eq.s32.totalorder %s45, 0
      %s48 = sadd.s32 %s47, 1
      %s49 = scalar_select %p46, %s47, %s48
      %p52 = pneg %p46
      %p53 = scmp.eq.s32.totalorder %s25, 5
      %p54 = por %p52, %p53
      %p55 = scmp.ne.s32.totalorder %s47, %s50
      %p56 = scmp.eq.s32.totalorder %s25, 0
      %p57 = por %p55, %p56
      %p58 = scmp.ne.s32.totalorder %s47, %s50
      %p59 = scmp.eq.s32.totalorder %s30, 5
      %p60 = por %p58, %p59
      %p61 = scmp.ne.s32.totalorder %s50, %s51
      %p62 = scmp.eq.s32.totalorder %s30, 0
      %p63 = por %p61, %p62
      %p64 = scmp.ne.s32.totalorder %s50, %s51
      %p65 = scmp.eq.s32.totalorder %s31, 5
      %p66 = por %p64, %p65
      %p68 = scmp.ne.s32.totalorder %s51, %s67
      %p69 = scmp.eq.s32.totalorder %s31, 0
      %p70 = por %p68, %p69
      %s72 = sadd.s32 %s71, 1
      %p75 = scmp.eq.s32.totalorder %s25, 5
      %p76 = scmp.ne.s32.totalorder %s71, %s73
      %p77 = scmp.eq.s32.totalorder %s25, 0
      %p78 = por %p76, %p77
      %p79 = scmp.ne.s32.totalorder %s71, %s73
      %p80 = scmp.eq.s32.totalorder %s30, 5
      %p81 = por %p79, %p80
      %p82 = scmp.ne.s32.totalorder %s73, %s74
      %p83 = scmp.eq.s32.totalorder %s30, 0
      %p84 = por %p82, %p83
      %p85 = scmp.ne.s32.totalorder %s73, %s74
      %p86 = scmp.eq.s32.totalorder %s31, 5
      %p87 = por %p85, %p86
      %p89 = scmp.ne.s32.totalorder %s74, %s88
      %p90 = scmp.eq.s32.totalorder %s31, 0
      %p91 = por %p89, %p90
      %s93 = sadd.s32 %s92, 1
      %p96 = scmp.eq.s32.totalorder %s25, 5
      %p97 = scmp.ne.s32.totalorder %s92, %s94
      %p98 = scmp.eq.s32.totalorder %s25, 0
      %p99 = por %p97, %p98
      %p100 = scmp.ne.s32.totalorder %s92, %s94
      %p101 = scmp.eq.s32.totalorder %s30, 5
      %p102 = por %p100, %p101
      %p103 = scmp.ne.s32.totalorder %s94, %s95
      %p104 = scmp.eq.s32.totalorder %s30, 0
      %p105 = por %p103, %p104
      %p106 = scmp.ne.s32.totalorder %s94, %s95
      %p107 = scmp.eq.s32.totalorder %s31, 5
      %p108 = por %p106, %p107
      %p110 = scmp.ne.s32.totalorder %s95, %s109
      %p111 = scmp.eq.s32.totalorder %s31, 0
      %p112 = por %p110, %p111
      %s114 = sadd.s32 %s113, 1
      %p117 = scmp.eq.s32.totalorder %s25, 5
      %p118 = scmp.ne.s32.totalorder %s113, %s115
      %p119 = scmp.eq.s32.totalorder %s25, 0
      %p120 = por %p118, %p119
      %p121 = scmp.ne.s32.totalorder %s113, %s115
      %p122 = scmp.eq.s32.totalorder %s30, 5
      %p123 = por %p121, %p122
      %p124 = scmp.ne.s32.totalorder %s115, %s116
      %p125 = scmp.eq.s32.totalorder %s30, 0
      %p126 = por %p124, %p125
      %p127 = scmp.ne.s32.totalorder %s115, %s116
      %p128 = scmp.eq.s32.totalorder %s31, 5
      %p129 = por %p127, %p128
      %p131 = scmp.ne.s32.totalorder %s116, %s130
      %p132 = scmp.eq.s32.totalorder %s31, 0
      %p133 = por %p131, %p132
      %s135 = sadd.s32 %s134, 1
      %p138 = scmp.eq.s32.totalorder %s25, 5
      %p139 = scmp.ne.s32.totalorder %s134, %s136
      %p140 = scmp.eq.s32.totalorder %s25, 0
      %p141 = por %p139, %p140
      %p142 = scmp.ne.s32.totalorder %s134, %s136
      %p143 = scmp.eq.s32.totalorder %s30, 5
      %p144 = por %p142, %p143
      %p145 = scmp.ne.s32.totalorder %s136, %s137
      %p146 = scmp.eq.s32.totalorder %s30, 0
      %p147 = por %p145, %p146
      %p148 = scmp.ne.s32.totalorder %s136, %s137
      %p149 = scmp.eq.s32.totalorder %s31, 5
      %p150 = por %p148, %p149
      %p152 = scmp.ne.s32.totalorder %s137, %s151
      %p153 = scmp.eq.s32.totalorder %s31, 0
      %p154 = por %p152, %p153
      %s156 = sadd.s32 %s155, 1
      %p159 = scmp.eq.s32.totalorder %s25, 5
      %p160 = scmp.ne.s32.totalorder %s155, %s157
      %p161 = scmp.eq.s32.totalorder %s25, 0
      %p162 = por %p160, %p161
      %p163 = scmp.ne.s32.totalorder %s155, %s157
      %p164 = scmp.eq.s32.totalorder %s30, 5
      %p165 = por %p163, %p164
      %p166 = scmp.ne.s32.totalorder %s157, %s158
      %p167 = scmp.eq.s32.totalorder %s30, 0
      %p168 = por %p166, %p167
      %p169 = scmp.ne.s32.totalorder %s157, %s158
      %p170 = scmp.eq.s32.totalorder %s31, 5
      %p171 = por %p169, %p170
      %p173 = scmp.ne.s32.totalorder %s158, %s172
      %p174 = scmp.eq.s32.totalorder %s31, 0
      %p175 = por %p173, %p174
      %s177 = sadd.s32 %s176, 1
      %p180 = scmp.eq.s32.totalorder %s25, 5
      %p181 = scmp.ne.s32.totalorder %s176, %s178
      %p182 = scmp.eq.s32.totalorder %s25, 0
      %p183 = por %p181, %p182
      %p184 = scmp.ne.s32.totalorder %s176, %s178
      %p185 = scmp.eq.s32.totalorder %s30, 5
      %p186 = por %p184, %p185
      %p187 = scmp.ne.s32.totalorder %s178, %s179
      %p188 = scmp.eq.s32.totalorder %s30, 0
      %p189 = por %p187, %p188
      %p190 = scmp.ne.s32.totalorder %s178, %s179
      %p191 = scmp.eq.s32.totalorder %s31, 5
      %p192 = por %p190, %p191
      %p194 = scmp.ne.s32.totalorder %s179, %s193
      %p195 = scmp.eq.s32.totalorder %s31, 0
      %p196 = por %p194, %p195
      %s197 = ssub.s32 %s33, %s40
      %p198 = scmp.eq.s32.totalorder %s197, 0
      %s200 = sadd.s32 %s199, 1
      %s201 = scalar_select %p198, %s199, %s200
      %p204 = pneg %p198
      %p205 = scmp.eq.s32.totalorder %s25, 5
      %p206 = por %p204, %p205
      %p207 = scmp.ne.s32.totalorder %s199, %s202
      %p208 = scmp.eq.s32.totalorder %s25, 0
      %p209 = por %p207, %p208
      %p210 = scmp.ne.s32.totalorder %s199, %s202
      %p211 = scmp.eq.s32.totalorder %s30, 5
      %p212 = por %p210, %p211
      %p213 = scmp.ne.s32.totalorder %s202, %s203
      %p214 = scmp.eq.s32.totalorder %s30, 0
      %p215 = por %p213, %p214
      %p216 = scmp.ne.s32.totalorder %s202, %s203
      %p217 = scmp.eq.s32.totalorder %s31, 5
      %p218 = por %p216, %p217
      %p220 = scmp.ne.s32.totalorder %s203, %s219
      %p221 = scmp.eq.s32.totalorder %s31, 0
      %p222 = por %p220, %p221
      %s223 = ssub.s32 %s33, %s40
      %p224 = scmp.eq.s32.totalorder %s223, 0
      %s226 = sadd.s32 %s225, 1
      %s227 = scalar_select %p224, %s225, %s226
      %p230 = pneg %p224
      %p231 = scmp.eq.s32.totalorder %s25, 5
      %p232 = por %p230, %p231
      %p233 = scmp.ne.s32.totalorder %s225, %s228
      %p234 = scmp.eq.s32.totalorder %s25, 0
      %p235 = por %p233, %p234
      %p236 = scmp.ne.s32.totalorder %s225, %s228
      %p237 = scmp.eq.s32.totalorder %s30, 5
      %p238 = por %p236, %p237
      %p239 = scmp.ne.s32.totalorder %s228, %s229
      %p240 = scmp.eq.s32.totalorder %s30, 0
      %p241 = por %p239, %p240
      %p242 = scmp.ne.s32.totalorder %s228, %s229
      %p243 = scmp.eq.s32.totalorder %s31, 5
      %p244 = por %p242, %p243
      %p246 = scmp.ne.s32.totalorder %s229, %s245
      %p247 = scmp.eq.s32.totalorder %s31, 0
      %p248 = por %p246, %p247
      %s249 = ssub.s32 %s32, %s44
      %s250 = ssub.s32 %s33, %s40
      %s251 = sor.u32 %s249, %s250
      %p252 = scmp.eq.s32.totalorder %s251, 0
      %s254 = sadd.s32 %s253, 1
      %s255 = scalar_select %p252, %s253, %s254
      %p258 = pneg %p252
      %p259 = scmp.eq.s32.totalorder %s25, 5
      %p260 = por %p258, %p259
      %p261 = scmp.ne.s32.totalorder %s253, %s256
      %p262 = scmp.eq.s32.totalorder %s25, 0
      %p263 = por %p261, %p262
      %p264 = scmp.ne.s32.totalorder %s253, %s256
      %p265 = scmp.eq.s32.totalorder %s30, 5
      %p266 = por %p264, %p265
      %p267 = scmp.ne.s32.totalorder %s256, %s257
      %p268 = scmp.eq.s32.totalorder %s30, 0
      %p269 = por %p267, %p268
      %p270 = scmp.ne.s32.totalorder %s256, %s257
      %p271 = scmp.eq.s32.totalorder %s31, 5
      %p272 = por %p270, %p271
      %p274 = scmp.ne.s32.totalorder %s257, %s273
      %p275 = scmp.eq.s32.totalorder %s31, 0
      %p276 = por %p274, %p275
      %p277 = scmp.le.s32.totalorder 1, %s25
      %p278 = scmp.lt.s32.totalorder %s25, 7
      %p279 = pnand %p277, %p278
      %p280 = pneg %p279
      // Predicated region
      $region9: #{tpu_custom_call.1} parent=5 // pred_check
        _
      $region10: #{tpu_custom_call.1} parent=5 // pred_check_branch
        %282 = sbr.rel (%p279) target = $region12
      $region11: #{tpu_custom_call.1} parent=5 // pred_region
        %s283 = ssub.s32 %s25, 1
        // Predicated region
        $region13: #{tpu_custom_call.1} parent=11 // pred_check
          %p284 = pneg %p63
        $region14: #{tpu_custom_call.1} parent=11 // pred_check_branch
          %286 = sbr.rel (%p284) target = $region16
        $region15: #{tpu_custom_call.1} parent=11 // pred_region
          %s288 = ssub.s32 64, 64
          %289 = vsyncadd [#allocation4], %s288
          %s290 = smul.addr %s34, 64
          %s291 = scalar_lea.hbm %s0, %s290
          %s293 = sshll.u32 [#allocation3], 4
          %s294 = int_to_ptr.vmem [resolvable:$true] %s293
          %296 = dma.hbm_to_vmem [thread:$0]  %s291, 64, %s294, [#allocation4]
        $region16: #{tpu_custom_call.1} parent=11 // pred_fallthru
          _
        // Predicated region
        $region17: #{tpu_custom_call.1} parent=11 // pred_check
          %p297 = pneg %p84
        $region18: #{tpu_custom_call.1} parent=11 // pred_check_branch
          %299 = sbr.rel (%p297) target = $region20
        $region19: #{tpu_custom_call.1} parent=11 // pred_region
          %s301 = ssub.s32 1024, 1024
          %302 = vsyncadd [#allocation7], %s301
          %s303 = sshll.u32 [#allocation6], 4
          %s304 = int_to_ptr.vmem [resolvable:$true] %s303
          %309 = dma.hbm_to_vmem [thread:$0]  %s1, 1024, %s304, [#allocation7], 64, 64, 4
        $region20: #{tpu_custom_call.1} parent=11 // pred_fallthru
          _
        // Predicated region
        $region21: #{tpu_custom_call.1} parent=11 // pred_check
          %p310 = pneg %p105
        $region22: #{tpu_custom_call.1} parent=11 // pred_check_branch
          %312 = sbr.rel (%p310) target = $region24
        $region23: #{tpu_custom_call.1} parent=11 // pred_region
          %s314 = ssub.s32 16, 16
          %315 = vsyncadd [#allocation7], %s314
          %s317 = sshll.u32 [#allocation8], 4
          %s318 = int_to_ptr.vmem [resolvable:$true] %s317
          %320 = dma.hbm_to_vmem [thread:$0]  %s2, 16, %s318, [#allocation7]
        $region24: #{tpu_custom_call.1} parent=11 // pred_fallthru
          _
        // Predicated region
        $region25: #{tpu_custom_call.1} parent=11 // pred_check
          %p321 = pneg %p126
        $region26: #{tpu_custom_call.1} parent=11 // pred_check_branch
          %323 = sbr.rel (%p321) target = $region28
        $region27: #{tpu_custom_call.1} parent=11 // pred_region
          %s325 = ssub.s32 2048, 2048
          %326 = vsyncadd [#allocation10], %s325
          %s327 = sshll.u32 [#allocation9], 4
          %s328 = int_to_ptr.vmem [resolvable:$true] %s327
          %333 = dma.hbm_to_vmem [thread:$0]  %s3, 2048, %s328, [#allocation10], 128, 128, 8
        $region28: #{tpu_custom_call.1} parent=11 // pred_fallthru
          _
        // Predicated region
        $region29: #{tpu_custom_call.1} parent=11 // pred_check
          %p334 = pneg %p147
        $region30: #{tpu_custom_call.1} parent=11 // pred_check_branch
          %336 = sbr.rel (%p334) target = $region32
        $region31: #{tpu_custom_call.1} parent=11 // pred_region
          %s338 = ssub.s32 32, 32
          %339 = vsyncadd [#allocation10], %s338
          %s341 = sshll.u32 [#allocation11], 4
          %s342 = int_to_ptr.vmem [resolvable:$true] %s341
          %344 = dma.hbm_to_vmem [thread:$0]  %s4, 32, %s342, [#allocation10]
        $region32: #{tpu_custom_call.1} parent=11 // pred_fallthru
          _
        // Predicated region
        $region33: #{tpu_custom_call.1} parent=11 // pred_check
          %p345 = pneg %p168
        $region34: #{tpu_custom_call.1} parent=11 // pred_check_branch
          %347 = sbr.rel (%p345) target = $region36
        $region35: #{tpu_custom_call.1} parent=11 // pred_region
          %s349 = ssub.s32 8192, 8192
          %350 = vsyncadd [#allocation13], %s349
          %s351 = sshll.u32 [#allocation12], 4
          %s352 = int_to_ptr.vmem [resolvable:$true] %s351
          %357 = dma.hbm_to_vmem [thread:$0]  %s5, 8192, %s352, [#allocation13], 256, 256, 16
        $region36: #{tpu_custom_call.1} parent=11 // pred_fallthru
          _
        // Predicated region
        $region37: #{tpu_custom_call.1} parent=11 // pred_check
          %p358 = pneg %p189
        $region38: #{tpu_custom_call.1} parent=11 // pred_check_branch
          %360 = sbr.rel (%p358) target = $region40
        $region39: #{tpu_custom_call.1} parent=11 // pred_region
          %s362 = ssub.s32 64, 64
          %363 = vsyncadd [#allocation13], %s362
          %s365 = sshll.u32 [#allocation14], 4
          %s366 = int_to_ptr.vmem [resolvable:$true] %s365
          %368 = dma.hbm_to_vmem [thread:$0]  %s6, 64, %s366, [#allocation13]
        $region40: #{tpu_custom_call.1} parent=11 // pred_fallthru
          _
      $region12: #{tpu_custom_call.1} parent=5 // pred_fallthru
        _
      %p369 = scmp.lt.s32.totalorder %s25, 6
      // Predicated region
      $region41: #{tpu_custom_call.1} parent=5 // pred_check
        %p370 = pneg %p369
      $region42: #{tpu_custom_call.1} parent=5 // pred_check_branch
        %372 = sbr.rel (%p370) target = $region44
      $region43: #{tpu_custom_call.1} parent=5 // pred_region
        // Predicated region
        $region45: #{tpu_custom_call.1} parent=43 // pred_check
          %p373 = pneg %p209
        $region46: #{tpu_custom_call.1} parent=43 // pred_check_branch
          %375 = sbr.rel (%p373) target = $region48
        $region47: #{tpu_custom_call.1} parent=43 // pred_region
          %s376 = sand.u32 %s25, 1
          %s377 = scalar_lea.sflag [#allocation16], %s376
          %s378 = sand.u32 %s199, 1
          %s379 = smul.addr %s378, 1024
          %s380 = scalar_lea.vmem [#allocation15], %s379
          %s381 = smul.u32 4, %s33
          %s383 = ssub.s32 16384, 16384
          %384 = vsyncadd %s377, %s383
          %s385 = smul.addr %s381, 64
          %s386 = scalar_lea.hbm %s7, %s385
          %s387 = sshll.u32 %s380, 4
          %s388 = int_to_ptr.vmem [resolvable:$true] %s387
          %393 = dma.hbm_to_vmem [thread:$0]  %s386, 16384, %s388, %s377, 1536, 256, 16
        $region48: #{tpu_custom_call.1} parent=43 // pred_fallthru
          _
        // Predicated region
        $region49: #{tpu_custom_call.1} parent=43 // pred_check
          %p394 = pneg %p235
        $region50: #{tpu_custom_call.1} parent=43 // pred_check_branch
          %396 = sbr.rel (%p394) target = $region52
        $region51: #{tpu_custom_call.1} parent=43 // pred_region
          %s397 = sand.u32 %s25, 1
          %s398 = scalar_lea.sflag [#allocation16], %s397
          %s399 = sand.u32 %s225, 1
          %s400 = smul.addr %s399, 4
          %s401 = scalar_lea.vmem [#allocation17], %s400
          %s402 = smul.u32 4, %s33
          %s404 = ssub.s32 64, 64
          %405 = vsyncadd %s398, %s404
          %s406 = smul.addr %s402, 16
          %s407 = scalar_lea.hbm %s8, %s406
          %s409 = sshll.u32 %s401, 4
          %s410 = int_to_ptr.vmem [resolvable:$true] %s409
          %412 = dma.hbm_to_vmem [thread:$0]  %s407, 64, %s410, %s398
        $region52: #{tpu_custom_call.1} parent=43 // pred_fallthru
          _
      $region44: #{tpu_custom_call.1} parent=5 // pred_fallthru
        _
      %p413 = scmp.le.s32.totalorder 1, %s25
      %p414 = scmp.lt.s32.totalorder %s25, 7
      %p415 = pnand %p413, %p414
      %p416 = pneg %p415
      // Predicated region
      $region53: #{tpu_custom_call.1} parent=5 // pred_check
        _
      $region54: #{tpu_custom_call.1} parent=5 // pred_check_branch
        %418 = sbr.rel (%p415) target = $region56
      $region55: #{tpu_custom_call.1} parent=5 // pred_region
        %s419 = ssub.s32 %s25, 1
        // Predicated region
        $region57: #{tpu_custom_call.1} parent=55 // pred_check
          %p420 = pneg %p63
        $region58: #{tpu_custom_call.1} parent=55 // pred_check_branch
          %422 = sbr.rel (%p420) target = $region60
        $region59: #{tpu_custom_call.1} parent=55 // pred_region
          %423 = dma.done [#allocation4], 64
        $region60: #{tpu_custom_call.1} parent=55 // pred_fallthru
          _
        // Predicated region
        $region61: #{tpu_custom_call.1} parent=55 // pred_check
          %p424 = pneg %p84
        $region62: #{tpu_custom_call.1} parent=55 // pred_check_branch
          %426 = sbr.rel (%p424) target = $region64
        $region63: #{tpu_custom_call.1} parent=55 // pred_region
          %427 = dma.done [#allocation7], 1024
        $region64: #{tpu_custom_call.1} parent=55 // pred_fallthru
          _
        // Predicated region
        $region65: #{tpu_custom_call.1} parent=55 // pred_check
          %p428 = pneg %p105
        $region66: #{tpu_custom_call.1} parent=55 // pred_check_branch
          %430 = sbr.rel (%p428) target = $region68
        $region67: #{tpu_custom_call.1} parent=55 // pred_region
          %431 = dma.done [#allocation7], 16
        $region68: #{tpu_custom_call.1} parent=55 // pred_fallthru
          _
        // Predicated region
        $region69: #{tpu_custom_call.1} parent=55 // pred_check
          %p432 = pneg %p126
        $region70: #{tpu_custom_call.1} parent=55 // pred_check_branch
          %434 = sbr.rel (%p432) target = $region72
        $region71: #{tpu_custom_call.1} parent=55 // pred_region
          %435 = dma.done [#allocation10], 2048
        $region72: #{tpu_custom_call.1} parent=55 // pred_fallthru
          _
        // Predicated region
        $region73: #{tpu_custom_call.1} parent=55 // pred_check
          %p436 = pneg %p147
        $region74: #{tpu_custom_call.1} parent=55 // pred_check_branch
          %438 = sbr.rel (%p436) target = $region76
        $region75: #{tpu_custom_call.1} parent=55 // pred_region
          %439 = dma.done [#allocation10], 32
        $region76: #{tpu_custom_call.1} parent=55 // pred_fallthru
          _
        // Predicated region
        $region77: #{tpu_custom_call.1} parent=55 // pred_check
          %p440 = pneg %p168
        $region78: #{tpu_custom_call.1} parent=55 // pred_check_branch
          %442 = sbr.rel (%p440) target = $region80
        $region79: #{tpu_custom_call.1} parent=55 // pred_region
          %443 = dma.done [#allocation13], 8192
        $region80: #{tpu_custom_call.1} parent=55 // pred_fallthru
          _
        // Predicated region
        $region81: #{tpu_custom_call.1} parent=55 // pred_check
          %p444 = pneg %p189
        $region82: #{tpu_custom_call.1} parent=55 // pred_check_branch
          %446 = sbr.rel (%p444) target = $region84
        $region83: #{tpu_custom_call.1} parent=55 // pred_region
          %447 = dma.done [#allocation13], 64
        $region84: #{tpu_custom_call.1} parent=55 // pred_fallthru
          _
        %s448 = sand.u32 %s30, 1
        %s449 = scalar_lea.sflag [#allocation16], %s448
        %s450 = sand.u32 %s202, 1
        %s451 = smul.addr %s450, 1024
        %s452 = scalar_lea.vmem [#allocation15], %s451
        // Predicated region
        $region85: #{tpu_custom_call.1} parent=55 // pred_check
          %p453 = pneg %p215
        $region86: #{tpu_custom_call.1} parent=55 // pred_check_branch
          %455 = sbr.rel (%p453) target = $region88
        $region87: #{tpu_custom_call.1} parent=55 // pred_region
          %456 = dma.done %s449, 16384
        $region88: #{tpu_custom_call.1} parent=55 // pred_fallthru
          _
        %s457 = sand.u32 %s30, 1
        %s458 = scalar_lea.sflag [#allocation16], %s457
        %s459 = sand.u32 %s228, 1
        %s460 = smul.addr %s459, 4
        %s461 = scalar_lea.vmem [#allocation17], %s460
        // Predicated region
        $region89: #{tpu_custom_call.1} parent=55 // pred_check
          %p462 = pneg %p241
        $region90: #{tpu_custom_call.1} parent=55 // pred_check_branch
          %464 = sbr.rel (%p462) target = $region92
        $region91: #{tpu_custom_call.1} parent=55 // pred_region
          %465 = dma.done %s458, 64
        $region92: #{tpu_custom_call.1} parent=55 // pred_fallthru
          _
        %p466 = pneg %p63
        %p467 = pneg %p60
        %p468 = pneg %p84
        %p469 = pneg %p81
        %p470 = pneg %p105
        %p471 = pneg %p102
        %p472 = pneg %p126
        %p473 = pneg %p123
        %p474 = pneg %p147
        %p475 = pneg %p144
        %p476 = pneg %p168
        %p477 = pneg %p165
        %p478 = pneg %p189
        %p479 = pneg %p186
        %s480 = sand.u32 %s30, 1
        %s481 = scalar_lea.sflag [#allocation16], %s480
        %s482 = sand.u32 %s202, 1
        %s483 = smul.addr %s482, 1024
        %s484 = scalar_lea.vmem [#allocation15], %s483
        %p485 = pneg %p215
        %p486 = pneg %p212
        %s487 = sand.u32 %s30, 1
        %s488 = scalar_lea.sflag [#allocation16], %s487
        %s489 = sand.u32 %s228, 1
        %s490 = smul.addr %s489, 4
        %s491 = scalar_lea.vmem [#allocation17], %s490
        %p492 = pneg %p241
        %p493 = pneg %p238
        %p494 = pneg %p269
        %p495 = pneg %p266
        %s496 = sand.u32 %s256, 1
        %s497 = scalar_lea.sflag [#allocation5], %s496
        %s498 = sand.u32 %s256, 1
        %s499 = smul.addr %s498, 16
        %s500 = scalar_lea.vmem [#allocation18], %s499
        %s501 = smul.u32 4, %s35
        %s502 = smul.u32 4, %s35
        %s503 = smul.u32 4, %s35
        %p505 = scmp.eq.s32.totalorder %s35, 0
        // Predicated region
        $region93: #{tpu_custom_call.1} parent=55 // pred_check
          %p506 = pneg %p505
        $region94: #{tpu_custom_call.1} parent=55 // pred_check_branch
          %508 = sbr.rel (%p506) target = $region96
        $region95: #{tpu_custom_call.1} parent=55 // pred_region
          %v509 = vld [vmem:[#allocation3] sm:$0xf]
          %v510 = vld [vmem:[#allocation6] sm:$0xf]
          %v511 = vld [vmem:[#allocation6 + $0x4] sm:$0xf]
          %v512 = vld [vmem:[#allocation6 + $0x8] sm:$0xf]
          %v513 = vld [vmem:[#allocation6 + $0xc] sm:$0xf]
          %v514 = vld [vmem:[#allocation6 + $0x10] sm:$0xf]
          %v515 = vld [vmem:[#allocation6 + $0x14] sm:$0xf]
          %v516 = vld [vmem:[#allocation6 + $0x18] sm:$0xf]
          %v517 = vld [vmem:[#allocation6 + $0x1c] sm:$0xf]
          %v518 = vld [vmem:[#allocation6 + $0x20] sm:$0xf]
          %v519 = vld [vmem:[#allocation6 + $0x24] sm:$0xf]
          %v520 = vld [vmem:[#allocation6 + $0x28] sm:$0xf]
          %v521 = vld [vmem:[#allocation6 + $0x2c] sm:$0xf]
          %v522 = vld [vmem:[#allocation6 + $0x30] sm:$0xf]
          %v523 = vld [vmem:[#allocation6 + $0x34] sm:$0xf]
          %v524 = vld [vmem:[#allocation6 + $0x38] sm:$0xf]
          %v525 = vld [vmem:[#allocation6 + $0x3c] sm:$0xf]
          %v526 = vld [vmem:[#allocation8] sm:$0x1]
          %v528 = vlaneseq
          %v529 = vshrl.u32 %v528, 7
          %v530 = vsub.s32 0, %v529
          %v531 = vrot.slane %v526, %v530
          %v549 = vunpack.c.l.b16 %v510
          %v550 = vunpack.c.l.b16 %v511
          %v551 = vunpack.c.l.b16 %v512
          %v552 = vunpack.c.l.b16 %v513
          %v553 = vunpack.c.l.b16 %v514
          %v554 = vunpack.c.l.b16 %v515
          %v555 = vunpack.c.l.b16 %v516
          %v556 = vunpack.c.l.b16 %v517
          %v557 = vunpack.c.l.b16 %v518
          %v558 = vunpack.c.l.b16 %v519
          %v559 = vunpack.c.l.b16 %v520
          %v560 = vunpack.c.l.b16 %v521
          %v561 = vunpack.c.l.b16 %v522
          %v562 = vunpack.c.l.b16 %v523
          %v563 = vunpack.c.l.b16 %v524
          %v564 = vunpack.c.l.b16 %v525
          %v565 = vpack.c.b16 %v550, %v549
          %v566 = vpack.c.b16 %v552, %v551
          %v567 = vpack.c.b16 %v554, %v553
          %v568 = vpack.c.b16 %v556, %v555
          %v569 = vpack.c.b16 %v558, %v557
          %v570 = vpack.c.b16 %v560, %v559
          %v571 = vpack.c.b16 %v562, %v561
          %v572 = vpack.c.b16 %v564, %v563
          %581 = vmatprep.subr.bf16.mxu0 0
          %582 = vmatpush1.bf16.msra.mxu0 %v565
          %583 = vmatprep.subr.bf16.mxu0 0
          %584 = vmatpush1.bf16.msra.mxu0 %v566
          %585 = vmatprep.subr.bf16.mxu0 0
          %586 = vmatpush1.bf16.msra.mxu0 %v567
          %587 = vmatprep.subr.bf16.mxu0 0
          %588 = vmatpush1.bf16.msra.mxu0 %v568
          %589 = vmatprep.subr.bf16.mxu0 0
          %590 = vmatpush1.bf16.msra.mxu0 %v569
          %591 = vmatprep.subr.bf16.mxu0 0
          %592 = vmatpush1.bf16.msra.mxu0 %v570
          %593 = vmatprep.subr.bf16.mxu0 0
          %594 = vmatpush1.bf16.msra.mxu0 %v571
          %595 = vmatprep.subr.bf16.mxu0 0
          %596 = vmatpush1.bf16.msra.mxu0 %v572
          %597 = vmatprep.subr.bf16.mxu0 0
          %598 = vmatpush1.bf16.msra.mxu0 0
          %599 = vmatprep.subr.bf16.mxu0 0
          %600 = vmatpush1.bf16.msra.mxu0 0
          %601 = vmatprep.subr.bf16.mxu0 0
          %602 = vmatpush1.bf16.msra.mxu0 0
          %603 = vmatprep.subr.bf16.mxu0 0
          %604 = vmatpush1.bf16.msra.mxu0 0
          %605 = vmatprep.subr.bf16.mxu0 0
          %606 = vmatpush1.bf16.msra.mxu0 0
          %607 = vmatprep.subr.bf16.mxu0 0
          %608 = vmatpush1.bf16.msra.mxu0 0
          %609 = vmatprep.subr.bf16.mxu0 0
          %610 = vmatpush1.bf16.msra.mxu0 0
          %611 = vmatprep.subr.bf16.mxu0 0
          %612 = vmatpush1.bf16.msra.mxu0 0
          %613 = vmatprep.mubr.bf16.mxu0 0
          %614 = vmatmul.mubr.bf16.gmra.mrb[0].mxu0 %v509
          %v615 = vpop.f32.mrb[0].mxu0
          %v616 = vadd.f32 %v531, %v615
          %v617 = vpop.f32.mrb[0].mxu0
          %v618 = vpop.f32.mrb[0].mxu0
          %v619 = vpop.f32.mrb[0].mxu0
          %620 = vdwg.mxu0
          %vm621 = vcmp.ge.f32.partialorder %v616, 0.0
          %v622 = vmul.f32 %v616, 0.2
          %v623 = vsel %vm621, %v616, %v622
          %v624 = vpack.c.bf16 %v623, %v623
          %v625 = vld [vmem:[#allocation9] sm:$0xff]
          %v626 = vld [vmem:[#allocation9 + $0x8] sm:$0xff]
          %v627 = vld [vmem:[#allocation9 + $0x10] sm:$0xff]
          %v628 = vld [vmem:[#allocation9 + $0x18] sm:$0xff]
          %v629 = vld [vmem:[#allocation9 + $0x20] sm:$0xff]
          %v630 = vld [vmem:[#allocation9 + $0x28] sm:$0xff]
          %v631 = vld [vmem:[#allocation9 + $0x30] sm:$0xff]
          %v632 = vld [vmem:[#allocation9 + $0x38] sm:$0xff]
          %v633 = vld [vmem:[#allocation9 + $0x40] sm:$0xff]
          %v634 = vld [vmem:[#allocation9 + $0x48] sm:$0xff]
          %v635 = vld [vmem:[#allocation9 + $0x50] sm:$0xff]
          %v636 = vld [vmem:[#allocation9 + $0x58] sm:$0xff]
          %v637 = vld [vmem:[#allocation9 + $0x60] sm:$0xff]
          %v638 = vld [vmem:[#allocation9 + $0x68] sm:$0xff]
          %v639 = vld [vmem:[#allocation9 + $0x70] sm:$0xff]
          %v640 = vld [vmem:[#allocation9 + $0x78] sm:$0xff]
          %v641 = vld [vmem:[#allocation11] sm:$0x3]
          %v643 = vlaneseq
          %v644 = vshrl.u32 %v643, 7
          %v645 = vsub.s32 0, %v644
          %v646 = vrot.slane %v641, %v645
          %v647 = vlaneseq
          %v648 = vshrl.u32 %v647, 7
          %v649 = vsub.s32 1, %v648
          %v650 = vrot.slane %v641, %v649
          %v669 = vunpack.c.l.b16 %v625
          %v670 = vunpack.c.h.b16 %v625
          %v671 = vunpack.c.l.b16 %v626
          %v672 = vunpack.c.h.b16 %v626
          %v673 = vunpack.c.l.b16 %v627
          %v674 = vunpack.c.h.b16 %v627
          %v675 = vunpack.c.l.b16 %v628
          %v676 = vunpack.c.h.b16 %v628
          %v677 = vunpack.c.l.b16 %v629
          %v678 = vunpack.c.h.b16 %v629
          %v679 = vunpack.c.l.b16 %v630
          %v680 = vunpack.c.h.b16 %v630
          %v681 = vunpack.c.l.b16 %v631
          %v682 = vunpack.c.h.b16 %v631
          %v683 = vunpack.c.l.b16 %v632
          %v684 = vunpack.c.h.b16 %v632
          %v685 = vunpack.c.l.b16 %v633
          %v686 = vunpack.c.h.b16 %v633
          %v687 = vunpack.c.l.b16 %v634
          %v688 = vunpack.c.h.b16 %v634
          %v689 = vunpack.c.l.b16 %v635
          %v690 = vunpack.c.h.b16 %v635
          %v691 = vunpack.c.l.b16 %v636
          %v692 = vunpack.c.h.b16 %v636
          %v693 = vunpack.c.l.b16 %v637
          %v694 = vunpack.c.h.b16 %v637
          %v695 = vunpack.c.l.b16 %v638
          %v696 = vunpack.c.h.b16 %v638
          %v697 = vunpack.c.l.b16 %v639
          %v698 = vunpack.c.h.b16 %v639
          %v699 = vunpack.c.l.b16 %v640
          %v700 = vunpack.c.h.b16 %v640
          %v701 = vpack.c.b16 %v671, %v669
          %v702 = vpack.c.b16 %v672, %v670
          %v703 = vpack.c.b16 %v675, %v673
          %v704 = vpack.c.b16 %v676, %v674
          %v705 = vpack.c.b16 %v679, %v677
          %v706 = vpack.c.b16 %v680, %v678
          %v707 = vpack.c.b16 %v683, %v681
          %v708 = vpack.c.b16 %v684, %v682
          %v709 = vpack.c.b16 %v687, %v685
          %v710 = vpack.c.b16 %v688, %v686
          %v711 = vpack.c.b16 %v691, %v689
          %v712 = vpack.c.b16 %v692, %v690
          %v713 = vpack.c.b16 %v695, %v693
          %v714 = vpack.c.b16 %v696, %v694
          %v715 = vpack.c.b16 %v699, %v697
          %v716 = vpack.c.b16 %v700, %v698
          %733 = vmatprep.subr.bf16.mxu0 %v702
          %734 = vmatpush1.bf16.msra.mxu0 %v701
          %735 = vmatprep.subr.bf16.mxu0 %v704
          %736 = vmatpush1.bf16.msra.mxu0 %v703
          %737 = vmatprep.subr.bf16.mxu0 %v706
          %738 = vmatpush1.bf16.msra.mxu0 %v705
          %739 = vmatprep.subr.bf16.mxu0 %v708
          %740 = vmatpush1.bf16.msra.mxu0 %v707
          %741 = vmatprep.subr.bf16.mxu0 %v710
          %742 = vmatpush1.bf16.msra.mxu0 %v709
          %743 = vmatprep.subr.bf16.mxu0 %v712
          %744 = vmatpush1.bf16.msra.mxu0 %v711
          %745 = vmatprep.subr.bf16.mxu0 %v714
          %746 = vmatpush1.bf16.msra.mxu0 %v713
          %747 = vmatprep.subr.bf16.mxu0 %v716
          %748 = vmatpush1.bf16.msra.mxu0 %v715
          %749 = vmatprep.subr.bf16.mxu0 0
          %750 = vmatpush1.bf16.msra.mxu0 0
          %751 = vmatprep.subr.bf16.mxu0 0
          %752 = vmatpush1.bf16.msra.mxu0 0
          %753 = vmatprep.subr.bf16.mxu0 0
          %754 = vmatpush1.bf16.msra.mxu0 0
          %755 = vmatprep.subr.bf16.mxu0 0
          %756 = vmatpush1.bf16.msra.mxu0 0
          %757 = vmatprep.subr.bf16.mxu0 0
          %758 = vmatpush1.bf16.msra.mxu0 0
          %759 = vmatprep.subr.bf16.mxu0 0
          %760 = vmatpush1.bf16.msra.mxu0 0
          %761 = vmatprep.subr.bf16.mxu0 0
          %762 = vmatpush1.bf16.msra.mxu0 0
          %763 = vmatprep.subr.bf16.mxu0 0
          %764 = vmatpush1.bf16.msra.mxu0 0
          %765 = vmatprep.mubr.bf16.mxu0 0
          %766 = vmatmul.mubr.bf16.gmra.mrb[0].mxu0 %v624
          %v767 = vpop.f32.mrb[0].mxu0
          %v768 = vadd.f32 %v646, %v767
          %v769 = vpop.f32.mrb[0].mxu0
          %v770 = vadd.f32 %v650, %v769
          %v771 = vpop.f32.mrb[0].mxu0
          %v772 = vpop.f32.mrb[0].mxu0
          %773 = vdwg.mxu0
          %vm774 = vcmp.ge.f32.partialorder %v768, 0.0
          %vm775 = vcmp.ge.f32.partialorder %v770, 0.0
          %v776 = vmul.f32 %v768, 0.2
          %v777 = vmul.f32 %v770, 0.2
          %v778 = vsel %vm774, %v768, %v776
          %v779 = vsel %vm775, %v770, %v777
          %v780 = vpack.c.bf16 %v778, %v778
          %v781 = vpack.c.bf16 %v779, %v779
          %v782 = vld [vmem:[#allocation12] sm:$0xff]
          %v783 = vld [vmem:[#allocation12 + $0x8] sm:$0xff]
          %v784 = vld [vmem:[#allocation12 + $0x10] sm:$0xff]
          %v785 = vld [vmem:[#allocation12 + $0x18] sm:$0xff]
          %v786 = vld [vmem:[#allocation12 + $0x20] sm:$0xff]
          %v787 = vld [vmem:[#allocation12 + $0x28] sm:$0xff]
          %v788 = vld [vmem:[#allocation12 + $0x30] sm:$0xff]
          %v789 = vld [vmem:[#allocation12 + $0x38] sm:$0xff]
          %v790 = vld [vmem:[#allocation12 + $0x40] sm:$0xff]
          %v791 = vld [vmem:[#allocation12 + $0x48] sm:$0xff]
          %v792 = vld [vmem:[#allocation12 + $0x50] sm:$0xff]
          %v793 = vld [vmem:[#allocation12 + $0x58] sm:$0xff]
          %v794 = vld [vmem:[#allocation12 + $0x60] sm:$0xff]
          %v795 = vld [vmem:[#allocation12 + $0x68] sm:$0xff]
          %v796 = vld [vmem:[#allocation12 + $0x70] sm:$0xff]
          %v797 = vld [vmem:[#allocation12 + $0x78] sm:$0xff]
          %v798 = vld [vmem:[#allocation12 + $0x80] sm:$0xff]
          %v799 = vld [vmem:[#allocation12 + $0x88] sm:$0xff]
          %v800 = vld [vmem:[#allocation12 + $0x90] sm:$0xff]
          %v801 = vld [vmem:[#allocation12 + $0x98] sm:$0xff]
          %v802 = vld [vmem:[#allocation12 + $0xa0] sm:$0xff]
          %v803 = vld [vmem:[#allocation12 + $0xa8] sm:$0xff]
          %v804 = vld [vmem:[#allocation12 + $0xb0] sm:$0xff]
          %v805 = vld [vmem:[#allocation12 + $0xb8] sm:$0xff]
          %v806 = vld [vmem:[#allocation12 + $0xc0] sm:$0xff]
          %v807 = vld [vmem:[#allocation12 + $0xc8] sm:$0xff]
          %v808 = vld [vmem:[#allocation12 + $0xd0] sm:$0xff]
          %v809 = vld [vmem:[#allocation12 + $0xd8] sm:$0xff]
          %v810 = vld [vmem:[#allocation12 + $0xe0] sm:$0xff]
          %v811 = vld [vmem:[#allocation12 + $0xe8] sm:$0xff]
          %v812 = vld [vmem:[#allocation12 + $0xf0] sm:$0xff]
          %v813 = vld [vmem:[#allocation12 + $0xf8] sm:$0xff]
          %v814 = vld [vmem:[#allocation12 + $0x100] sm:$0xff]
          %v815 = vld [vmem:[#allocation12 + $0x108] sm:$0xff]
          %v816 = vld [vmem:[#allocation12 + $0x110] sm:$0xff]
          %v817 = vld [vmem:[#allocation12 + $0x118] sm:$0xff]
          %v818 = vld [vmem:[#allocation12 + $0x120] sm:$0xff]
          %v819 = vld [vmem:[#allocation12 + $0x128] sm:$0xff]
          %v820 = vld [vmem:[#allocation12 + $0x130] sm:$0xff]
          %v821 = vld [vmem:[#allocation12 + $0x138] sm:$0xff]
          %v822 = vld [vmem:[#allocation12 + $0x140] sm:$0xff]
          %v823 = vld [vmem:[#allocation12 + $0x148] sm:$0xff]
          %v824 = vld [vmem:[#allocation12 + $0x150] sm:$0xff]
          %v825 = vld [vmem:[#allocation12 + $0x158] sm:$0xff]
          %v826 = vld [vmem:[#allocation12 + $0x160] sm:$0xff]
          %v827 = vld [vmem:[#allocation12 + $0x168] sm:$0xff]
          %v828 = vld [vmem:[#allocation12 + $0x170] sm:$0xff]
          %v829 = vld [vmem:[#allocation12 + $0x178] sm:$0xff]
          %v830 = vld [vmem:[#allocation12 + $0x180] sm:$0xff]
          %v831 = vld [vmem:[#allocation12 + $0x188] sm:$0xff]
          %v832 = vld [vmem:[#allocation12 + $0x190] sm:$0xff]
          %v833 = vld [vmem:[#allocation12 + $0x198] sm:$0xff]
          %v834 = vld [vmem:[#allocation12 + $0x1a0] sm:$0xff]
          %v835 = vld [vmem:[#allocation12 + $0x1a8] sm:$0xff]
          %v836 = vld [vmem:[#allocation12 + $0x1b0] sm:$0xff]
          %v837 = vld [vmem:[#allocation12 + $0x1b8] sm:$0xff]
          %v838 = vld [vmem:[#allocation12 + $0x1c0] sm:$0xff]
          %v839 = vld [vmem:[#allocation12 + $0x1c8] sm:$0xff]
          %v840 = vld [vmem:[#allocation12 + $0x1d0] sm:$0xff]
          %v841 = vld [vmem:[#allocation12 + $0x1d8] sm:$0xff]
          %v842 = vld [vmem:[#allocation12 + $0x1e0] sm:$0xff]
          %v843 = vld [vmem:[#allocation12 + $0x1e8] sm:$0xff]
          %v844 = vld [vmem:[#allocation12 + $0x1f0] sm:$0xff]
          %v845 = vld [vmem:[#allocation12 + $0x1f8] sm:$0xff]
          %v846 = vld [vmem:[#allocation14] sm:$0xf]
          %v848 = vlaneseq
          %v849 = vshrl.u32 %v848, 7
          %v850 = vsub.s32 0, %v849
          %v851 = vrot.slane %v846, %v850
          %v852 = vlaneseq
          %v853 = vshrl.u32 %v852, 7
          %v854 = vsub.s32 1, %v853
          %v855 = vrot.slane %v846, %v854
          %v856 = vlaneseq
          %v857 = vshrl.u32 %v856, 7
          %v858 = vsub.s32 2, %v857
          %v859 = vrot.slane %v846, %v858
          %v860 = vlaneseq
          %v861 = vshrl.u32 %v860, 7
          %v862 = vsub.s32 3, %v861
          %v863 = vrot.slane %v846, %v862
          %v932 = vunpack.c.l.b16 %v782
          %v933 = vunpack.c.h.b16 %v782
          %v934 = vunpack.c.l.b16 %v783
          %v935 = vunpack.c.h.b16 %v783
          %v936 = vunpack.c.l.b16 %v784
          %v937 = vunpack.c.h.b16 %v784
          %v938 = vunpack.c.l.b16 %v785
          %v939 = vunpack.c.h.b16 %v785
          %v940 = vunpack.c.l.b16 %v786
          %v941 = vunpack.c.h.b16 %v786
          %v942 = vunpack.c.l.b16 %v787
          %v943 = vunpack.c.h.b16 %v787
          %v944 = vunpack.c.l.b16 %v788
          %v945 = vunpack.c.h.b16 %v788
          %v946 = vunpack.c.l.b16 %v789
          %v947 = vunpack.c.h.b16 %v789
          %v948 = vunpack.c.l.b16 %v790
          %v949 = vunpack.c.h.b16 %v790
          %v950 = vunpack.c.l.b16 %v791
          %v951 = vunpack.c.h.b16 %v791
          %v952 = vunpack.c.l.b16 %v792
          %v953 = vunpack.c.h.b16 %v792
          %v954 = vunpack.c.l.b16 %v793
          %v955 = vunpack.c.h.b16 %v793
          %v956 = vunpack.c.l.b16 %v794
          %v957 = vunpack.c.h.b16 %v794
          %v958 = vunpack.c.l.b16 %v795
          %v959 = vunpack.c.h.b16 %v795
          %v960 = vunpack.c.l.b16 %v796
          %v961 = vunpack.c.h.b16 %v796
          %v962 = vunpack.c.l.b16 %v797
          %v963 = vunpack.c.h.b16 %v797
          %v964 = vunpack.c.l.b16 %v798
          %v965 = vunpack.c.h.b16 %v798
          %v966 = vunpack.c.l.b16 %v799
          %v967 = vunpack.c.h.b16 %v799
          %v968 = vunpack.c.l.b16 %v800
          %v969 = vunpack.c.h.b16 %v800
          %v970 = vunpack.c.l.b16 %v801
          %v971 = vunpack.c.h.b16 %v801
          %v972 = vunpack.c.l.b16 %v802
          %v973 = vunpack.c.h.b16 %v802
          %v974 = vunpack.c.l.b16 %v803
          %v975 = vunpack.c.h.b16 %v803
          %v976 = vunpack.c.l.b16 %v804
          %v977 = vunpack.c.h.b16 %v804
          %v978 = vunpack.c.l.b16 %v805
          %v979 = vunpack.c.h.b16 %v805
          %v980 = vunpack.c.l.b16 %v806
          %v981 = vunpack.c.h.b16 %v806
          %v982 = vunpack.c.l.b16 %v807
          %v983 = vunpack.c.h.b16 %v807
          %v984 = vunpack.c.l.b16 %v808
          %v985 = vunpack.c.h.b16 %v808
          %v986 = vunpack.c.l.b16 %v809
          %v987 = vunpack.c.h.b16 %v809
          %v988 = vunpack.c.l.b16 %v810
          %v989 = vunpack.c.h.b16 %v810
          %v990 = vunpack.c.l.b16 %v811
          %v991 = vunpack.c.h.b16 %v811
          %v992 = vunpack.c.l.b16 %v812
          %v993 = vunpack.c.h.b16 %v812
          %v994 = vunpack.c.l.b16 %v813
          %v995 = vunpack.c.h.b16 %v813
          %v996 = vunpack.c.l.b16 %v814
          %v997 = vunpack.c.h.b16 %v814
          %v998 = vunpack.c.l.b16 %v815
          %v999 = vunpack.c.h.b16 %v815
          %v1000 = vunpack.c.l.b16 %v816
          %v1001 = vunpack.c.h.b16 %v816
          %v1002 = vunpack.c.l.b16 %v817
          %v1003 = vunpack.c.h.b16 %v817
          %v1004 = vunpack.c.l.b16 %v818
          %v1005 = vunpack.c.h.b16 %v818
          %v1006 = vunpack.c.l.b16 %v819
          %v1007 = vunpack.c.h.b16 %v819
          %v1008 = vunpack.c.l.b16 %v820
          %v1009 = vunpack.c.h.b16 %v820
          %v1010 = vunpack.c.l.b16 %v821
          %v1011 = vunpack.c.h.b16 %v821
          %v1012 = vunpack.c.l.b16 %v822
          %v1013 = vunpack.c.h.b16 %v822
          %v1014 = vunpack.c.l.b16 %v823
          %v1015 = vunpack.c.h.b16 %v823
          %v1016 = vunpack.c.l.b16 %v824
          %v1017 = vunpack.c.h.b16 %v824
          %v1018 = vunpack.c.l.b16 %v825
          %v1019 = vunpack.c.h.b16 %v825
          %v1020 = vunpack.c.l.b16 %v826
          %v1021 = vunpack.c.h.b16 %v826
          %v1022 = vunpack.c.l.b16 %v827
          %v1023 = vunpack.c.h.b16 %v827
          %v1024 = vunpack.c.l.b16 %v828
          %v1025 = vunpack.c.h.b16 %v828
          %v1026 = vunpack.c.l.b16 %v829
          %v1027 = vunpack.c.h.b16 %v829
          %v1028 = vunpack.c.l.b16 %v830
          %v1029 = vunpack.c.h.b16 %v830
          %v1030 = vunpack.c.l.b16 %v831
          %v1031 = vunpack.c.h.b16 %v831
          %v1032 = vunpack.c.l.b16 %v832
          %v1033 = vunpack.c.h.b16 %v832
          %v1034 = vunpack.c.l.b16 %v833
          %v1035 = vunpack.c.h.b16 %v833
          %v1036 = vunpack.c.l.b16 %v834
          %v1037 = vunpack.c.h.b16 %v834
          %v1038 = vunpack.c.l.b16 %v835
          %v1039 = vunpack.c.h.b16 %v835
          %v1040 = vunpack.c.l.b16 %v836
          %v1041 = vunpack.c.h.b16 %v836
          %v1042 = vunpack.c.l.b16 %v837
          %v1043 = vunpack.c.h.b16 %v837
          %v1044 = vunpack.c.l.b16 %v838
          %v1045 = vunpack.c.h.b16 %v838
          %v1046 = vunpack.c.l.b16 %v839
          %v1047 = vunpack.c.h.b16 %v839
          %v1048 = vunpack.c.l.b16 %v840
          %v1049 = vunpack.c.h.b16 %v840
          %v1050 = vunpack.c.l.b16 %v841
          %v1051 = vunpack.c.h.b16 %v841
          %v1052 = vunpack.c.l.b16 %v842
          %v1053 = vunpack.c.h.b16 %v842
          %v1054 = vunpack.c.l.b16 %v843
          %v1055 = vunpack.c.h.b16 %v843
          %v1056 = vunpack.c.l.b16 %v844
          %v1057 = vunpack.c.h.b16 %v844
          %v1058 = vunpack.c.l.b16 %v845
          %v1059 = vunpack.c.h.b16 %v845
          %v1060 = vpack.c.b16 %v936, %v932
          %v1061 = vpack.c.b16 %v937, %v933
          %v1062 = vpack.c.b16 %v938, %v934
          %v1063 = vpack.c.b16 %v939, %v935
          %v1064 = vpack.c.b16 %v944, %v940
          %v1065 = vpack.c.b16 %v945, %v941
          %v1066 = vpack.c.b16 %v946, %v942
          %v1067 = vpack.c.b16 %v947, %v943
          %v1068 = vpack.c.b16 %v952, %v948
          %v1069 = vpack.c.b16 %v953, %v949
          %v1070 = vpack.c.b16 %v954, %v950
          %v1071 = vpack.c.b16 %v955, %v951
          %v1072 = vpack.c.b16 %v960, %v956
          %v1073 = vpack.c.b16 %v961, %v957
          %v1074 = vpack.c.b16 %v962, %v958
          %v1075 = vpack.c.b16 %v963, %v959
          %v1076 = vpack.c.b16 %v968, %v964
          %v1077 = vpack.c.b16 %v969, %v965
          %v1078 = vpack.c.b16 %v970, %v966
          %v1079 = vpack.c.b16 %v971, %v967
          %v1080 = vpack.c.b16 %v976, %v972
          %v1081 = vpack.c.b16 %v977, %v973
          %v1082 = vpack.c.b16 %v978, %v974
          %v1083 = vpack.c.b16 %v979, %v975
          %v1084 = vpack.c.b16 %v984, %v980
          %v1085 = vpack.c.b16 %v985, %v981
          %v1086 = vpack.c.b16 %v986, %v982
          %v1087 = vpack.c.b16 %v987, %v983
          %v1088 = vpack.c.b16 %v992, %v988
          %v1089 = vpack.c.b16 %v993, %v989
          %v1090 = vpack.c.b16 %v994, %v990
          %v1091 = vpack.c.b16 %v995, %v991
          %v1092 = vpack.c.b16 %v1000, %v996
          %v1093 = vpack.c.b16 %v1001, %v997
          %v1094 = vpack.c.b16 %v1002, %v998
          %v1095 = vpack.c.b16 %v1003, %v999
          %v1096 = vpack.c.b16 %v1008, %v1004
          %v1097 = vpack.c.b16 %v1009, %v1005
          %v1098 = vpack.c.b16 %v1010, %v1006
          %v1099 = vpack.c.b16 %v1011, %v1007
          %v1100 = vpack.c.b16 %v1016, %v1012
          %v1101 = vpack.c.b16 %v1017, %v1013
          %v1102 = vpack.c.b16 %v1018, %v1014
          %v1103 = vpack.c.b16 %v1019, %v1015
          %v1104 = vpack.c.b16 %v1024, %v1020
          %v1105 = vpack.c.b16 %v1025, %v1021
          %v1106 = vpack.c.b16 %v1026, %v1022
          %v1107 = vpack.c.b16 %v1027, %v1023
          %v1108 = vpack.c.b16 %v1032, %v1028
          %v1109 = vpack.c.b16 %v1033, %v1029
          %v1110 = vpack.c.b16 %v1034, %v1030
          %v1111 = vpack.c.b16 %v1035, %v1031
          %v1112 = vpack.c.b16 %v1040, %v1036
          %v1113 = vpack.c.b16 %v1041, %v1037
          %v1114 = vpack.c.b16 %v1042, %v1038
          %v1115 = vpack.c.b16 %v1043, %v1039
          %v1116 = vpack.c.b16 %v1048, %v1044
          %v1117 = vpack.c.b16 %v1049, %v1045
          %v1118 = vpack.c.b16 %v1050, %v1046
          %v1119 = vpack.c.b16 %v1051, %v1047
          %v1120 = vpack.c.b16 %v1056, %v1052
          %v1121 = vpack.c.b16 %v1057, %v1053
          %v1122 = vpack.c.b16 %v1058, %v1054
          %v1123 = vpack.c.b16 %v1059, %v1055
          %1188 = vmatprep.subr.bf16.mxu0 %v1061
          %1189 = vmatpush1.bf16.msra.mxu0 %v1060
          %1190 = vmatprep.subr.bf16.mxu0 %v1065
          %1191 = vmatpush1.bf16.msra.mxu0 %v1064
          %1192 = vmatprep.subr.bf16.mxu0 %v1069
          %1193 = vmatpush1.bf16.msra.mxu0 %v1068
          %1194 = vmatprep.subr.bf16.mxu0 %v1073
          %1195 = vmatpush1.bf16.msra.mxu0 %v1072
          %1196 = vmatprep.subr.bf16.mxu0 %v1077
          %1197 = vmatpush1.bf16.msra.mxu0 %v1076
          %1198 = vmatprep.subr.bf16.mxu0 %v1081
          %1199 = vmatpush1.bf16.msra.mxu0 %v1080
          %1200 = vmatprep.subr.bf16.mxu0 %v1085
          %1201 = vmatpush1.bf16.msra.mxu0 %v1084
          %1202 = vmatprep.subr.bf16.mxu0 %v1089
          %1203 = vmatpush1.bf16.msra.mxu0 %v1088
          %1204 = vmatprep.subr.bf16.mxu0 %v1093
          %1205 = vmatpush1.bf16.msra.mxu0 %v1092
          %1206 = vmatprep.subr.bf16.mxu0 %v1097
          %1207 = vmatpush1.bf16.msra.mxu0 %v1096
          %1208 = vmatprep.subr.bf16.mxu0 %v1101
          %1209 = vmatpush1.bf16.msra.mxu0 %v1100
          %1210 = vmatprep.subr.bf16.mxu0 %v1105
          %1211 = vmatpush1.bf16.msra.mxu0 %v1104
          %1212 = vmatprep.subr.bf16.mxu0 %v1109
          %1213 = vmatpush1.bf16.msra.mxu0 %v1108
          %1214 = vmatprep.subr.bf16.mxu0 %v1113
          %1215 = vmatpush1.bf16.msra.mxu0 %v1112
          %1216 = vmatprep.subr.bf16.mxu0 %v1117
          %1217 = vmatpush1.bf16.msra.mxu0 %v1116
          %1218 = vmatprep.subr.bf16.mxu0 %v1121
          %1219 = vmatpush1.bf16.msra.mxu0 %v1120
          %1220 = vmatprep.mubr.bf16.mxu0 %v781
          %1221 = vmatmul.mubr.bf16.gmra.mrb[0].mxu0 %v780
          %v1222 = vpop.f32.mrb[0].mxu0
          %v1223 = vadd.f32 %v851, %v1222
          %v1224 = vpop.f32.mrb[0].mxu0
          %v1225 = vadd.f32 %v855, %v1224
          %v1226 = vpop.f32.mrb[0].mxu0
          %v1227 = vpop.f32.mrb[0].mxu0
          %1228 = vdwg.mxu0
          %1229 = vmatprep.subr.bf16.mxu0 %v1063
          %1230 = vmatpush1.bf16.msra.mxu0 %v1062
          %1231 = vmatprep.subr.bf16.mxu0 %v1067
          %1232 = vmatpush1.bf16.msra.mxu0 %v1066
          %1233 = vmatprep.subr.bf16.mxu0 %v1071
          %1234 = vmatpush1.bf16.msra.mxu0 %v1070
          %1235 = vmatprep.subr.bf16.mxu0 %v1075
          %1236 = vmatpush1.bf16.msra.mxu0 %v1074
          %1237 = vmatprep.subr.bf16.mxu0 %v1079
          %1238 = vmatpush1.bf16.msra.mxu0 %v1078
          %1239 = vmatprep.subr.bf16.mxu0 %v1083
          %1240 = vmatpush1.bf16.msra.mxu0 %v1082
          %1241 = vmatprep.subr.bf16.mxu0 %v1087
          %1242 = vmatpush1.bf16.msra.mxu0 %v1086
          %1243 = vmatprep.subr.bf16.mxu0 %v1091
          %1244 = vmatpush1.bf16.msra.mxu0 %v1090
          %1245 = vmatprep.subr.bf16.mxu0 %v1095
          %1246 = vmatpush1.bf16.msra.mxu0 %v1094
          %1247 = vmatprep.subr.bf16.mxu0 %v1099
          %1248 = vmatpush1.bf16.msra.mxu0 %v1098
          %1249 = vmatprep.subr.bf16.mxu0 %v1103
          %1250 = vmatpush1.bf16.msra.mxu0 %v1102
          %1251 = vmatprep.subr.bf16.mxu0 %v1107
          %1252 = vmatpush1.bf16.msra.mxu0 %v1106
          %1253 = vmatprep.subr.bf16.mxu0 %v1111
          %1254 = vmatpush1.bf16.msra.mxu0 %v1110
          %1255 = vmatprep.subr.bf16.mxu0 %v1115
          %1256 = vmatpush1.bf16.msra.mxu0 %v1114
          %1257 = vmatprep.subr.bf16.mxu0 %v1119
          %1258 = vmatpush1.bf16.msra.mxu0 %v1118
          %1259 = vmatprep.subr.bf16.mxu0 %v1123
          %1260 = vmatpush1.bf16.msra.mxu0 %v1122
          %1261 = vmatprep.mubr.bf16.mxu0 %v781
          %1262 = vmatmul.mubr.bf16.gmra.mrb[0].mxu0 %v780
          %v1263 = vpop.f32.mrb[0].mxu0
          %v1264 = vadd.f32 %v859, %v1263
          %v1265 = vpop.f32.mrb[0].mxu0
          %v1266 = vadd.f32 %v863, %v1265
          %v1267 = vpop.f32.mrb[0].mxu0
          %v1268 = vpop.f32.mrb[0].mxu0
          %1269 = vdwg.mxu0
          %vm1270 = vcmp.ge.f32.partialorder %v1223, 0.0
          %vm1271 = vcmp.ge.f32.partialorder %v1225, 0.0
          %vm1272 = vcmp.ge.f32.partialorder %v1264, 0.0
          %vm1273 = vcmp.ge.f32.partialorder %v1266, 0.0
          %v1274 = vmul.f32 %v1223, 0.2
          %v1275 = vmul.f32 %v1225, 0.2
          %v1276 = vmul.f32 %v1264, 0.2
          %v1277 = vmul.f32 %v1266, 0.2
          %v1278 = vsel %vm1270, %v1223, %v1274
          %v1279 = vsel %vm1271, %v1225, %v1275
          %v1280 = vsel %vm1272, %v1264, %v1276
          %v1281 = vsel %vm1273, %v1266, %v1277
          %v1282 = vpack.c.bf16 %v1278, %v1278
          %v1283 = vpack.c.bf16 %v1279, %v1279
          %v1284 = vpack.c.bf16 %v1280, %v1280
          %v1285 = vpack.c.bf16 %v1281, %v1281
          %v1290 = vunpack.c.l.b16 %v1282
          %v1291 = vunpack.c.l.b16 %v1283
          %v1292 = vunpack.c.l.b16 %v1284
          %v1293 = vunpack.c.l.b16 %v1285
          %v1294 = vpack.c.b16 %v1291, %v1290
          %v1295 = vpack.c.b16 %v1293, %v1292
          %1298 = vst [vmem:[#allocation2] sm:$0xff] %v1294
          %1299 = vst [vmem:[#allocation2 + $0x8] sm:$0xff] %v1295
        $region96: #{tpu_custom_call.1} parent=55 // pred_fallthru
          _
        %v1300 = vld [vmem:[#allocation2] sm:$0xff]
        %v1301 = vld [vmem:[#allocation2 + $0x8] sm:$0xff]
        %v1302 = vld [vmem:[%s452] sm:$0xff]
        %v1303 = vld [vmem:[%s452 + $0x8] sm:$0xff]
        %v1304 = vld [vmem:[%s452 + $0x10] sm:$0xff]
        %v1305 = vld [vmem:[%s452 + $0x18] sm:$0xff]
        %v1306 = vld [vmem:[%s452 + $0x20] sm:$0xff]
        %v1307 = vld [vmem:[%s452 + $0x28] sm:$0xff]
        %v1308 = vld [vmem:[%s452 + $0x30] sm:$0xff]
        %v1309 = vld [vmem:[%s452 + $0x38] sm:$0xff]
        %v1310 = vld [vmem:[%s452 + $0x40] sm:$0xff]
        %v1311 = vld [vmem:[%s452 + $0x48] sm:$0xff]
        %v1312 = vld [vmem:[%s452 + $0x50] sm:$0xff]
        %v1313 = vld [vmem:[%s452 + $0x58] sm:$0xff]
        %v1314 = vld [vmem:[%s452 + $0x60] sm:$0xff]
        %v1315 = vld [vmem:[%s452 + $0x68] sm:$0xff]
        %v1316 = vld [vmem:[%s452 + $0x70] sm:$0xff]
        %v1317 = vld [vmem:[%s452 + $0x78] sm:$0xff]
        %v1318 = vld [vmem:[%s452 + $0x80] sm:$0xff]
        %v1319 = vld [vmem:[%s452 + $0x88] sm:$0xff]
        %v1320 = vld [vmem:[%s452 + $0x90] sm:$0xff]
        %v1321 = vld [vmem:[%s452 + $0x98] sm:$0xff]
        %v1322 = vld [vmem:[%s452 + $0xa0] sm:$0xff]
        %v1323 = vld [vmem:[%s452 + $0xa8] sm:$0xff]
        %v1324 = vld [vmem:[%s452 + $0xb0] sm:$0xff]
        %v1325 = vld [vmem:[%s452 + $0xb8] sm:$0xff]
        %v1326 = vld [vmem:[%s452 + $0xc0] sm:$0xff]
        %v1327 = vld [vmem:[%s452 + $0xc8] sm:$0xff]
        %v1328 = vld [vmem:[%s452 + $0xd0] sm:$0xff]
        %v1329 = vld [vmem:[%s452 + $0xd8] sm:$0xff]
        %v1330 = vld [vmem:[%s452 + $0xe0] sm:$0xff]
        %v1331 = vld [vmem:[%s452 + $0xe8] sm:$0xff]
        %v1332 = vld [vmem:[%s452 + $0xf0] sm:$0xff]
        %v1333 = vld [vmem:[%s452 + $0xf8] sm:$0xff]
        %v1334 = vld [vmem:[%s452 + $0x100] sm:$0xff]
        %v1335 = vld [vmem:[%s452 + $0x108] sm:$0xff]
        %v1336 = vld [vmem:[%s452 + $0x110] sm:$0xff]
        %v1337 = vld [vmem:[%s452 + $0x118] sm:$0xff]
        %v1338 = vld [vmem:[%s452 + $0x120] sm:$0xff]
        %v1339 = vld [vmem:[%s452 + $0x128] sm:$0xff]
        %v1340 = vld [vmem:[%s452 + $0x130] sm:$0xff]
        %v1341 = vld [vmem:[%s452 + $0x138] sm:$0xff]
        %v1342 = vld [vmem:[%s452 + $0x140] sm:$0xff]
        %v1343 = vld [vmem:[%s452 + $0x148] sm:$0xff]
        %v1344 = vld [vmem:[%s452 + $0x150] sm:$0xff]
        %v1345 = vld [vmem:[%s452 + $0x158] sm:$0xff]
        %v1346 = vld [vmem:[%s452 + $0x160] sm:$0xff]
        %v1347 = vld [vmem:[%s452 + $0x168] sm:$0xff]
        %v1348 = vld [vmem:[%s452 + $0x170] sm:$0xff]
        %v1349 = vld [vmem:[%s452 + $0x178] sm:$0xff]
        %v1350 = vld [vmem:[%s452 + $0x180] sm:$0xff]
        %v1351 = vld [vmem:[%s452 + $0x188] sm:$0xff]
        %v1352 = vld [vmem:[%s452 + $0x190] sm:$0xff]
        %v1353 = vld [vmem:[%s452 + $0x198] sm:$0xff]
        %v1354 = vld [vmem:[%s452 + $0x1a0] sm:$0xff]
        %v1355 = vld [vmem:[%s452 + $0x1a8] sm:$0xff]
        %v1356 = vld [vmem:[%s452 + $0x1b0] sm:$0xff]
        %v1357 = vld [vmem:[%s452 + $0x1b8] sm:$0xff]
        %v1358 = vld [vmem:[%s452 + $0x1c0] sm:$0xff]
        %v1359 = vld [vmem:[%s452 + $0x1c8] sm:$0xff]
        %v1360 = vld [vmem:[%s452 + $0x1d0] sm:$0xff]
        %v1361 = vld [vmem:[%s452 + $0x1d8] sm:$0xff]
        %v1362 = vld [vmem:[%s452 + $0x1e0] sm:$0xff]
        %v1363 = vld [vmem:[%s452 + $0x1e8] sm:$0xff]
        %v1364 = vld [vmem:[%s452 + $0x1f0] sm:$0xff]
        %v1365 = vld [vmem:[%s452 + $0x1f8] sm:$0xff]
        %v1366 = vld [vmem:[%s452 + $0x200] sm:$0xff]
        %v1367 = vld [vmem:[%s452 + $0x208] sm:$0xff]
        %v1368 = vld [vmem:[%s452 + $0x210] sm:$0xff]
        %v1369 = vld [vmem:[%s452 + $0x218] sm:$0xff]
        %v1370 = vld [vmem:[%s452 + $0x220] sm:$0xff]
        %v1371 = vld [vmem:[%s452 + $0x228] sm:$0xff]
        %v1372 = vld [vmem:[%s452 + $0x230] sm:$0xff]
        %v1373 = vld [vmem:[%s452 + $0x238] sm:$0xff]
        %v1374 = vld [vmem:[%s452 + $0x240] sm:$0xff]
        %v1375 = vld [vmem:[%s452 + $0x248] sm:$0xff]
        %v1376 = vld [vmem:[%s452 + $0x250] sm:$0xff]
        %v1377 = vld [vmem:[%s452 + $0x258] sm:$0xff]
        %v1378 = vld [vmem:[%s452 + $0x260] sm:$0xff]
        %v1379 = vld [vmem:[%s452 + $0x268] sm:$0xff]
        %v1380 = vld [vmem:[%s452 + $0x270] sm:$0xff]
        %v1381 = vld [vmem:[%s452 + $0x278] sm:$0xff]
        %v1382 = vld [vmem:[%s452 + $0x280] sm:$0xff]
        %v1383 = vld [vmem:[%s452 + $0x288] sm:$0xff]
        %v1384 = vld [vmem:[%s452 + $0x290] sm:$0xff]
        %v1385 = vld [vmem:[%s452 + $0x298] sm:$0xff]
        %v1386 = vld [vmem:[%s452 + $0x2a0] sm:$0xff]
        %v1387 = vld [vmem:[%s452 + $0x2a8] sm:$0xff]
        %v1388 = vld [vmem:[%s452 + $0x2b0] sm:$0xff]
        %v1389 = vld [vmem:[%s452 + $0x2b8] sm:$0xff]
        %v1390 = vld [vmem:[%s452 + $0x2c0] sm:$0xff]
        %v1391 = vld [vmem:[%s452 + $0x2c8] sm:$0xff]
        %v1392 = vld [vmem:[%s452 + $0x2d0] sm:$0xff]
        %v1393 = vld [vmem:[%s452 + $0x2d8] sm:$0xff]
        %v1394 = vld [vmem:[%s452 + $0x2e0] sm:$0xff]
        %v1395 = vld [vmem:[%s452 + $0x2e8] sm:$0xff]
        %v1396 = vld [vmem:[%s452 + $0x2f0] sm:$0xff]
        %v1397 = vld [vmem:[%s452 + $0x2f8] sm:$0xff]
        %v1398 = vld [vmem:[%s452 + $0x300] sm:$0xff]
        %v1399 = vld [vmem:[%s452 + $0x308] sm:$0xff]
        %v1400 = vld [vmem:[%s452 + $0x310] sm:$0xff]
        %v1401 = vld [vmem:[%s452 + $0x318] sm:$0xff]
        %v1402 = vld [vmem:[%s452 + $0x320] sm:$0xff]
        %v1403 = vld [vmem:[%s452 + $0x328] sm:$0xff]
        %v1404 = vld [vmem:[%s452 + $0x330] sm:$0xff]
        %v1405 = vld [vmem:[%s452 + $0x338] sm:$0xff]
        %v1406 = vld [vmem:[%s452 + $0x340] sm:$0xff]
        %v1407 = vld [vmem:[%s452 + $0x348] sm:$0xff]
        %v1408 = vld [vmem:[%s452 + $0x350] sm:$0xff]
        %v1409 = vld [vmem:[%s452 + $0x358] sm:$0xff]
        %v1410 = vld [vmem:[%s452 + $0x360] sm:$0xff]
        %v1411 = vld [vmem:[%s452 + $0x368] sm:$0xff]
        %v1412 = vld [vmem:[%s452 + $0x370] sm:$0xff]
        %v1413 = vld [vmem:[%s452 + $0x378] sm:$0xff]
        %v1414 = vld [vmem:[%s452 + $0x380] sm:$0xff]
        %v1415 = vld [vmem:[%s452 + $0x388] sm:$0xff]
        %v1416 = vld [vmem:[%s452 + $0x390] sm:$0xff]
        %v1417 = vld [vmem:[%s452 + $0x398] sm:$0xff]
        %v1418 = vld [vmem:[%s452 + $0x3a0] sm:$0xff]
        %v1419 = vld [vmem:[%s452 + $0x3a8] sm:$0xff]
        %v1420 = vld [vmem:[%s452 + $0x3b0] sm:$0xff]
        %v1421 = vld [vmem:[%s452 + $0x3b8] sm:$0xff]
        %v1422 = vld [vmem:[%s452 + $0x3c0] sm:$0xff]
        %v1423 = vld [vmem:[%s452 + $0x3c8] sm:$0xff]
        %v1424 = vld [vmem:[%s452 + $0x3d0] sm:$0xff]
        %v1425 = vld [vmem:[%s452 + $0x3d8] sm:$0xff]
        %v1426 = vld [vmem:[%s452 + $0x3e0] sm:$0xff]
        %v1427 = vld [vmem:[%s452 + $0x3e8] sm:$0xff]
        %v1428 = vld [vmem:[%s452 + $0x3f0] sm:$0xff]
        %v1429 = vld [vmem:[%s452 + $0x3f8] sm:$0xff]
        %v1430 = vld [vmem:[%s461] sm:$0xf]
        %v1432 = vlaneseq
        %v1433 = vshrl.u32 %v1432, 7
        %v1434 = vsub.s32 0, %v1433
        %v1435 = vrot.slane %v1430, %v1434
        %v1436 = vlaneseq
        %v1437 = vshrl.u32 %v1436, 7
        %v1438 = vsub.s32 1, %v1437
        %v1439 = vrot.slane %v1430, %v1438
        %v1440 = vlaneseq
        %v1441 = vshrl.u32 %v1440, 7
        %v1442 = vsub.s32 2, %v1441
        %v1443 = vrot.slane %v1430, %v1442
        %v1444 = vlaneseq
        %v1445 = vshrl.u32 %v1444, 7
        %v1446 = vsub.s32 3, %v1445
        %v1447 = vrot.slane %v1430, %v1446
        %v1454 = vunpack.c.l.b16 %v1300
        %v1455 = vunpack.c.h.b16 %v1300
        %v1456 = vunpack.c.l.b16 %v1301
        %v1457 = vunpack.c.h.b16 %v1301
        %v1458 = vpack.c.b16 %v1454, %v1454
        %v1459 = vpack.c.b16 %v1455, %v1455
        %v1460 = vpack.c.b16 %v1456, %v1456
        %v1461 = vpack.c.b16 %v1457, %v1457
        %v1594 = vunpack.c.l.b16 %v1302
        %v1595 = vunpack.c.h.b16 %v1302
        %v1596 = vunpack.c.l.b16 %v1303
        %v1597 = vunpack.c.h.b16 %v1303
        %v1598 = vunpack.c.l.b16 %v1304
        %v1599 = vunpack.c.h.b16 %v1304
        %v1600 = vunpack.c.l.b16 %v1305
        %v1601 = vunpack.c.h.b16 %v1305
        %v1602 = vunpack.c.l.b16 %v1306
        %v1603 = vunpack.c.h.b16 %v1306
        %v1604 = vunpack.c.l.b16 %v1307
        %v1605 = vunpack.c.h.b16 %v1307
        %v1606 = vunpack.c.l.b16 %v1308
        %v1607 = vunpack.c.h.b16 %v1308
        %v1608 = vunpack.c.l.b16 %v1309
        %v1609 = vunpack.c.h.b16 %v1309
        %v1610 = vunpack.c.l.b16 %v1310
        %v1611 = vunpack.c.h.b16 %v1310
        %v1612 = vunpack.c.l.b16 %v1311
        %v1613 = vunpack.c.h.b16 %v1311
        %v1614 = vunpack.c.l.b16 %v1312
        %v1615 = vunpack.c.h.b16 %v1312
        %v1616 = vunpack.c.l.b16 %v1313
        %v1617 = vunpack.c.h.b16 %v1313
        %v1618 = vunpack.c.l.b16 %v1314
        %v1619 = vunpack.c.h.b16 %v1314
        %v1620 = vunpack.c.l.b16 %v1315
        %v1621 = vunpack.c.h.b16 %v1315
        %v1622 = vunpack.c.l.b16 %v1316
        %v1623 = vunpack.c.h.b16 %v1316
        %v1624 = vunpack.c.l.b16 %v1317
        %v1625 = vunpack.c.h.b16 %v1317
        %v1626 = vunpack.c.l.b16 %v1318
        %v1627 = vunpack.c.h.b16 %v1318
        %v1628 = vunpack.c.l.b16 %v1319
        %v1629 = vunpack.c.h.b16 %v1319
        %v1630 = vunpack.c.l.b16 %v1320
        %v1631 = vunpack.c.h.b16 %v1320
        %v1632 = vunpack.c.l.b16 %v1321
        %v1633 = vunpack.c.h.b16 %v1321
        %v1634 = vunpack.c.l.b16 %v1322
        %v1635 = vunpack.c.h.b16 %v1322
        %v1636 = vunpack.c.l.b16 %v1323
        %v1637 = vunpack.c.h.b16 %v1323
        %v1638 = vunpack.c.l.b16 %v1324
        %v1639 = vunpack.c.h.b16 %v1324
        %v1640 = vunpack.c.l.b16 %v1325
        %v1641 = vunpack.c.h.b16 %v1325
        %v1642 = vunpack.c.l.b16 %v1326
        %v1643 = vunpack.c.h.b16 %v1326
        %v1644 = vunpack.c.l.b16 %v1327
        %v1645 = vunpack.c.h.b16 %v1327
        %v1646 = vunpack.c.l.b16 %v1328
        %v1647 = vunpack.c.h.b16 %v1328
        %v1648 = vunpack.c.l.b16 %v1329
        %v1649 = vunpack.c.h.b16 %v1329
        %v1650 = vunpack.c.l.b16 %v1330
        %v1651 = vunpack.c.h.b16 %v1330
        %v1652 = vunpack.c.l.b16 %v1331
        %v1653 = vunpack.c.h.b16 %v1331
        %v1654 = vunpack.c.l.b16 %v1332
        %v1655 = vunpack.c.h.b16 %v1332
        %v1656 = vunpack.c.l.b16 %v1333
        %v1657 = vunpack.c.h.b16 %v1333
        %v1658 = vunpack.c.l.b16 %v1334
        %v1659 = vunpack.c.h.b16 %v1334
        %v1660 = vunpack.c.l.b16 %v1335
        %v1661 = vunpack.c.h.b16 %v1335
        %v1662 = vunpack.c.l.b16 %v1336
        %v1663 = vunpack.c.h.b16 %v1336
        %v1664 = vunpack.c.l.b16 %v1337
        %v1665 = vunpack.c.h.b16 %v1337
        %v1666 = vunpack.c.l.b16 %v1338
        %v1667 = vunpack.c.h.b16 %v1338
        %v1668 = vunpack.c.l.b16 %v1339
        %v1669 = vunpack.c.h.b16 %v1339
        %v1670 = vunpack.c.l.b16 %v1340
        %v1671 = vunpack.c.h.b16 %v1340
        %v1672 = vunpack.c.l.b16 %v1341
        %v1673 = vunpack.c.h.b16 %v1341
        %v1674 = vunpack.c.l.b16 %v1342
        %v1675 = vunpack.c.h.b16 %v1342
        %v1676 = vunpack.c.l.b16 %v1343
        %v1677 = vunpack.c.h.b16 %v1343
        %v1678 = vunpack.c.l.b16 %v1344
        %v1679 = vunpack.c.h.b16 %v1344
        %v1680 = vunpack.c.l.b16 %v1345
        %v1681 = vunpack.c.h.b16 %v1345
        %v1682 = vunpack.c.l.b16 %v1346
        %v1683 = vunpack.c.h.b16 %v1346
        %v1684 = vunpack.c.l.b16 %v1347
        %v1685 = vunpack.c.h.b16 %v1347
        %v1686 = vunpack.c.l.b16 %v1348
        %v1687 = vunpack.c.h.b16 %v1348
        %v1688 = vunpack.c.l.b16 %v1349
        %v1689 = vunpack.c.h.b16 %v1349
        %v1690 = vunpack.c.l.b16 %v1350
        %v1691 = vunpack.c.h.b16 %v1350
        %v1692 = vunpack.c.l.b16 %v1351
        %v1693 = vunpack.c.h.b16 %v1351
        %v1694 = vunpack.c.l.b16 %v1352
        %v1695 = vunpack.c.h.b16 %v1352
        %v1696 = vunpack.c.l.b16 %v1353
        %v1697 = vunpack.c.h.b16 %v1353
        %v1698 = vunpack.c.l.b16 %v1354
        %v1699 = vunpack.c.h.b16 %v1354
        %v1700 = vunpack.c.l.b16 %v1355
        %v1701 = vunpack.c.h.b16 %v1355
        %v1702 = vunpack.c.l.b16 %v1356
        %v1703 = vunpack.c.h.b16 %v1356
        %v1704 = vunpack.c.l.b16 %v1357
        %v1705 = vunpack.c.h.b16 %v1357
        %v1706 = vunpack.c.l.b16 %v1358
        %v1707 = vunpack.c.h.b16 %v1358
        %v1708 = vunpack.c.l.b16 %v1359
        %v1709 = vunpack.c.h.b16 %v1359
        %v1710 = vunpack.c.l.b16 %v1360
        %v1711 = vunpack.c.h.b16 %v1360
        %v1712 = vunpack.c.l.b16 %v1361
        %v1713 = vunpack.c.h.b16 %v1361
        %v1714 = vunpack.c.l.b16 %v1362
        %v1715 = vunpack.c.h.b16 %v1362
        %v1716 = vunpack.c.l.b16 %v1363
        %v1717 = vunpack.c.h.b16 %v1363
        %v1718 = vunpack.c.l.b16 %v1364
        %v1719 = vunpack.c.h.b16 %v1364
        %v1720 = vunpack.c.l.b16 %v1365
        %v1721 = vunpack.c.h.b16 %v1365
        %v1722 = vunpack.c.l.b16 %v1366
        %v1723 = vunpack.c.h.b16 %v1366
        %v1724 = vunpack.c.l.b16 %v1367
        %v1725 = vunpack.c.h.b16 %v1367
        %v1726 = vunpack.c.l.b16 %v1368
        %v1727 = vunpack.c.h.b16 %v1368
        %v1728 = vunpack.c.l.b16 %v1369
        %v1729 = vunpack.c.h.b16 %v1369
        %v1730 = vunpack.c.l.b16 %v1370
        %v1731 = vunpack.c.h.b16 %v1370
        %v1732 = vunpack.c.l.b16 %v1371
        %v1733 = vunpack.c.h.b16 %v1371
        %v1734 = vunpack.c.l.b16 %v1372
        %v1735 = vunpack.c.h.b16 %v1372
        %v1736 = vunpack.c.l.b16 %v1373
        %v1737 = vunpack.c.h.b16 %v1373
        %v1738 = vunpack.c.l.b16 %v1374
        %v1739 = vunpack.c.h.b16 %v1374
        %v1740 = vunpack.c.l.b16 %v1375
        %v1741 = vunpack.c.h.b16 %v1375
        %v1742 = vunpack.c.l.b16 %v1376
        %v1743 = vunpack.c.h.b16 %v1376
        %v1744 = vunpack.c.l.b16 %v1377
        %v1745 = vunpack.c.h.b16 %v1377
        %v1746 = vunpack.c.l.b16 %v1378
        %v1747 = vunpack.c.h.b16 %v1378
        %v1748 = vunpack.c.l.b16 %v1379
        %v1749 = vunpack.c.h.b16 %v1379
        %v1750 = vunpack.c.l.b16 %v1380
        %v1751 = vunpack.c.h.b16 %v1380
        %v1752 = vunpack.c.l.b16 %v1381
        %v1753 = vunpack.c.h.b16 %v1381
        %v1754 = vunpack.c.l.b16 %v1382
        %v1755 = vunpack.c.h.b16 %v1382
        %v1756 = vunpack.c.l.b16 %v1383
        %v1757 = vunpack.c.h.b16 %v1383
        %v1758 = vunpack.c.l.b16 %v1384
        %v1759 = vunpack.c.h.b16 %v1384
        %v1760 = vunpack.c.l.b16 %v1385
        %v1761 = vunpack.c.h.b16 %v1385
        %v1762 = vunpack.c.l.b16 %v1386
        %v1763 = vunpack.c.h.b16 %v1386
        %v1764 = vunpack.c.l.b16 %v1387
        %v1765 = vunpack.c.h.b16 %v1387
        %v1766 = vunpack.c.l.b16 %v1388
        %v1767 = vunpack.c.h.b16 %v1388
        %v1768 = vunpack.c.l.b16 %v1389
        %v1769 = vunpack.c.h.b16 %v1389
        %v1770 = vunpack.c.l.b16 %v1390
        %v1771 = vunpack.c.h.b16 %v1390
        %v1772 = vunpack.c.l.b16 %v1391
        %v1773 = vunpack.c.h.b16 %v1391
        %v1774 = vunpack.c.l.b16 %v1392
        %v1775 = vunpack.c.h.b16 %v1392
        %v1776 = vunpack.c.l.b16 %v1393
        %v1777 = vunpack.c.h.b16 %v1393
        %v1778 = vunpack.c.l.b16 %v1394
        %v1779 = vunpack.c.h.b16 %v1394
        %v1780 = vunpack.c.l.b16 %v1395
        %v1781 = vunpack.c.h.b16 %v1395
        %v1782 = vunpack.c.l.b16 %v1396
        %v1783 = vunpack.c.h.b16 %v1396
        %v1784 = vunpack.c.l.b16 %v1397
        %v1785 = vunpack.c.h.b16 %v1397
        %v1786 = vunpack.c.l.b16 %v1398
        %v1787 = vunpack.c.h.b16 %v1398
        %v1788 = vunpack.c.l.b16 %v1399
        %v1789 = vunpack.c.h.b16 %v1399
        %v1790 = vunpack.c.l.b16 %v1400
        %v1791 = vunpack.c.h.b16 %v1400
        %v1792 = vunpack.c.l.b16 %v1401
        %v1793 = vunpack.c.h.b16 %v1401
        %v1794 = vunpack.c.l.b16 %v1402
        %v1795 = vunpack.c.h.b16 %v1402
        %v1796 = vunpack.c.l.b16 %v1403
        %v1797 = vunpack.c.h.b16 %v1403
        %v1798 = vunpack.c.l.b16 %v1404
        %v1799 = vunpack.c.h.b16 %v1404
        %v1800 = vunpack.c.l.b16 %v1405
        %v1801 = vunpack.c.h.b16 %v1405
        %v1802 = vunpack.c.l.b16 %v1406
        %v1803 = vunpack.c.h.b16 %v1406
        %v1804 = vunpack.c.l.b16 %v1407
        %v1805 = vunpack.c.h.b16 %v1407
        %v1806 = vunpack.c.l.b16 %v1408
        %v1807 = vunpack.c.h.b16 %v1408
        %v1808 = vunpack.c.l.b16 %v1409
        %v1809 = vunpack.c.h.b16 %v1409
        %v1810 = vunpack.c.l.b16 %v1410
        %v1811 = vunpack.c.h.b16 %v1410
        %v1812 = vunpack.c.l.b16 %v1411
        %v1813 = vunpack.c.h.b16 %v1411
        %v1814 = vunpack.c.l.b16 %v1412
        %v1815 = vunpack.c.h.b16 %v1412
        %v1816 = vunpack.c.l.b16 %v1413
        %v1817 = vunpack.c.h.b16 %v1413
        %v1818 = vunpack.c.l.b16 %v1414
        %v1819 = vunpack.c.h.b16 %v1414
        %v1820 = vunpack.c.l.b16 %v1415
        %v1821 = vunpack.c.h.b16 %v1415
        %v1822 = vunpack.c.l.b16 %v1416
        %v1823 = vunpack.c.h.b16 %v1416
        %v1824 = vunpack.c.l.b16 %v1417
        %v1825 = vunpack.c.h.b16 %v1417
        %v1826 = vunpack.c.l.b16 %v1418
        %v1827 = vunpack.c.h.b16 %v1418
        %v1828 = vunpack.c.l.b16 %v1419
        %v1829 = vunpack.c.h.b16 %v1419
        %v1830 = vunpack.c.l.b16 %v1420
        %v1831 = vunpack.c.h.b16 %v1420
        %v1832 = vunpack.c.l.b16 %v1421
        %v1833 = vunpack.c.h.b16 %v1421
        %v1834 = vunpack.c.l.b16 %v1422
        %v1835 = vunpack.c.h.b16 %v1422
        %v1836 = vunpack.c.l.b16 %v1423
        %v1837 = vunpack.c.h.b16 %v1423
        %v1838 = vunpack.c.l.b16 %v1424
        %v1839 = vunpack.c.h.b16 %v1424
        %v1840 = vunpack.c.l.b16 %v1425
        %v1841 = vunpack.c.h.b16 %v1425
        %v1842 = vunpack.c.l.b16 %v1426
        %v1843 = vunpack.c.h.b16 %v1426
        %v1844 = vunpack.c.l.b16 %v1427
        %v1845 = vunpack.c.h.b16 %v1427
        %v1846 = vunpack.c.l.b16 %v1428
        %v1847 = vunpack.c.h.b16 %v1428
        %v1848 = vunpack.c.l.b16 %v1429
        %v1849 = vunpack.c.h.b16 %v1429
        %v1850 = vpack.c.b16 %v1598, %v1594
        %v1851 = vpack.c.b16 %v1599, %v1595
        %v1852 = vpack.c.b16 %v1600, %v1596
        %v1853 = vpack.c.b16 %v1601, %v1597
        %v1854 = vpack.c.b16 %v1606, %v1602
        %v1855 = vpack.c.b16 %v1607, %v1603
        %v1856 = vpack.c.b16 %v1608, %v1604
        %v1857 = vpack.c.b16 %v1609, %v1605
        %v1858 = vpack.c.b16 %v1614, %v1610
        %v1859 = vpack.c.b16 %v1615, %v1611
        %v1860 = vpack.c.b16 %v1616, %v1612
        %v1861 = vpack.c.b16 %v1617, %v1613
        %v1862 = vpack.c.b16 %v1622, %v1618
        %v1863 = vpack.c.b16 %v1623, %v1619
        %v1864 = vpack.c.b16 %v1624, %v1620
        %v1865 = vpack.c.b16 %v1625, %v1621
        %v1866 = vpack.c.b16 %v1630, %v1626
        %v1867 = vpack.c.b16 %v1631, %v1627
        %v1868 = vpack.c.b16 %v1632, %v1628
        %v1869 = vpack.c.b16 %v1633, %v1629
        %v1870 = vpack.c.b16 %v1638, %v1634
        %v1871 = vpack.c.b16 %v1639, %v1635
        %v1872 = vpack.c.b16 %v1640, %v1636
        %v1873 = vpack.c.b16 %v1641, %v1637
        %v1874 = vpack.c.b16 %v1646, %v1642
        %v1875 = vpack.c.b16 %v1647, %v1643
        %v1876 = vpack.c.b16 %v1648, %v1644
        %v1877 = vpack.c.b16 %v1649, %v1645
        %v1878 = vpack.c.b16 %v1654, %v1650
        %v1879 = vpack.c.b16 %v1655, %v1651
        %v1880 = vpack.c.b16 %v1656, %v1652
        %v1881 = vpack.c.b16 %v1657, %v1653
        %v1882 = vpack.c.b16 %v1662, %v1658
        %v1883 = vpack.c.b16 %v1663, %v1659
        %v1884 = vpack.c.b16 %v1664, %v1660
        %v1885 = vpack.c.b16 %v1665, %v1661
        %v1886 = vpack.c.b16 %v1670, %v1666
        %v1887 = vpack.c.b16 %v1671, %v1667
        %v1888 = vpack.c.b16 %v1672, %v1668
        %v1889 = vpack.c.b16 %v1673, %v1669
        %v1890 = vpack.c.b16 %v1678, %v1674
        %v1891 = vpack.c.b16 %v1679, %v1675
        %v1892 = vpack.c.b16 %v1680, %v1676
        %v1893 = vpack.c.b16 %v1681, %v1677
        %v1894 = vpack.c.b16 %v1686, %v1682
        %v1895 = vpack.c.b16 %v1687, %v1683
        %v1896 = vpack.c.b16 %v1688, %v1684
        %v1897 = vpack.c.b16 %v1689, %v1685
        %v1898 = vpack.c.b16 %v1694, %v1690
        %v1899 = vpack.c.b16 %v1695, %v1691
        %v1900 = vpack.c.b16 %v1696, %v1692
        %v1901 = vpack.c.b16 %v1697, %v1693
        %v1902 = vpack.c.b16 %v1702, %v1698
        %v1903 = vpack.c.b16 %v1703, %v1699
        %v1904 = vpack.c.b16 %v1704, %v1700
        %v1905 = vpack.c.b16 %v1705, %v1701
        %v1906 = vpack.c.b16 %v1710, %v1706
        %v1907 = vpack.c.b16 %v1711, %v1707
        %v1908 = vpack.c.b16 %v1712, %v1708
        %v1909 = vpack.c.b16 %v1713, %v1709
        %v1910 = vpack.c.b16 %v1718, %v1714
        %v1911 = vpack.c.b16 %v1719, %v1715
        %v1912 = vpack.c.b16 %v1720, %v1716
        %v1913 = vpack.c.b16 %v1721, %v1717
        %v1914 = vpack.c.b16 %v1726, %v1722
        %v1915 = vpack.c.b16 %v1727, %v1723
        %v1916 = vpack.c.b16 %v1728, %v1724
        %v1917 = vpack.c.b16 %v1729, %v1725
        %v1918 = vpack.c.b16 %v1734, %v1730
        %v1919 = vpack.c.b16 %v1735, %v1731
        %v1920 = vpack.c.b16 %v1736, %v1732
        %v1921 = vpack.c.b16 %v1737, %v1733
        %v1922 = vpack.c.b16 %v1742, %v1738
        %v1923 = vpack.c.b16 %v1743, %v1739
        %v1924 = vpack.c.b16 %v1744, %v1740
        %v1925 = vpack.c.b16 %v1745, %v1741
        %v1926 = vpack.c.b16 %v1750, %v1746
        %v1927 = vpack.c.b16 %v1751, %v1747
        %v1928 = vpack.c.b16 %v1752, %v1748
        %v1929 = vpack.c.b16 %v1753, %v1749
        %v1930 = vpack.c.b16 %v1758, %v1754
        %v1931 = vpack.c.b16 %v1759, %v1755
        %v1932 = vpack.c.b16 %v1760, %v1756
        %v1933 = vpack.c.b16 %v1761, %v1757
        %v1934 = vpack.c.b16 %v1766, %v1762
        %v1935 = vpack.c.b16 %v1767, %v1763
        %v1936 = vpack.c.b16 %v1768, %v1764
        %v1937 = vpack.c.b16 %v1769, %v1765
        %v1938 = vpack.c.b16 %v1774, %v1770
        %v1939 = vpack.c.b16 %v1775, %v1771
        %v1940 = vpack.c.b16 %v1776, %v1772
        %v1941 = vpack.c.b16 %v1777, %v1773
        %v1942 = vpack.c.b16 %v1782, %v1778
        %v1943 = vpack.c.b16 %v1783, %v1779
        %v1944 = vpack.c.b16 %v1784, %v1780
        %v1945 = vpack.c.b16 %v1785, %v1781
        %v1946 = vpack.c.b16 %v1790, %v1786
        %v1947 = vpack.c.b16 %v1791, %v1787
        %v1948 = vpack.c.b16 %v1792, %v1788
        %v1949 = vpack.c.b16 %v1793, %v1789
        %v1950 = vpack.c.b16 %v1798, %v1794
        %v1951 = vpack.c.b16 %v1799, %v1795
        %v1952 = vpack.c.b16 %v1800, %v1796
        %v1953 = vpack.c.b16 %v1801, %v1797
        %v1954 = vpack.c.b16 %v1806, %v1802
        %v1955 = vpack.c.b16 %v1807, %v1803
        %v1956 = vpack.c.b16 %v1808, %v1804
        %v1957 = vpack.c.b16 %v1809, %v1805
        %v1958 = vpack.c.b16 %v1814, %v1810
        %v1959 = vpack.c.b16 %v1815, %v1811
        %v1960 = vpack.c.b16 %v1816, %v1812
        %v1961 = vpack.c.b16 %v1817, %v1813
        %v1962 = vpack.c.b16 %v1822, %v1818
        %v1963 = vpack.c.b16 %v1823, %v1819
        %v1964 = vpack.c.b16 %v1824, %v1820
        %v1965 = vpack.c.b16 %v1825, %v1821
        %v1966 = vpack.c.b16 %v1830, %v1826
        %v1967 = vpack.c.b16 %v1831, %v1827
        %v1968 = vpack.c.b16 %v1832, %v1828
        %v1969 = vpack.c.b16 %v1833, %v1829
        %v1970 = vpack.c.b16 %v1838, %v1834
        %v1971 = vpack.c.b16 %v1839, %v1835
        %v1972 = vpack.c.b16 %v1840, %v1836
        %v1973 = vpack.c.b16 %v1841, %v1837
        %v1974 = vpack.c.b16 %v1846, %v1842
        %v1975 = vpack.c.b16 %v1847, %v1843
        %v1976 = vpack.c.b16 %v1848, %v1844
        %v1977 = vpack.c.b16 %v1849, %v1845
        %2106 = vmatprep.subr.bf16.mxu0 %v1851
        %2107 = vmatpush1.bf16.msra.mxu0 %v1850
        %2108 = vmatprep.subr.bf16.mxu0 %v1855
        %2109 = vmatpush1.bf16.msra.mxu0 %v1854
        %2110 = vmatprep.subr.bf16.mxu0 %v1859
        %2111 = vmatpush1.bf16.msra.mxu0 %v1858
        %2112 = vmatprep.subr.bf16.mxu0 %v1863
        %2113 = vmatpush1.bf16.msra.mxu0 %v1862
        %2114 = vmatprep.subr.bf16.mxu0 %v1867
        %2115 = vmatpush1.bf16.msra.mxu0 %v1866
        %2116 = vmatprep.subr.bf16.mxu0 %v1871
        %2117 = vmatpush1.bf16.msra.mxu0 %v1870
        %2118 = vmatprep.subr.bf16.mxu0 %v1875
        %2119 = vmatpush1.bf16.msra.mxu0 %v1874
        %2120 = vmatprep.subr.bf16.mxu0 %v1879
        %2121 = vmatpush1.bf16.msra.mxu0 %v1878
        %2122 = vmatprep.subr.bf16.mxu0 %v1883
        %2123 = vmatpush1.bf16.msra.mxu0 %v1882
        %2124 = vmatprep.subr.bf16.mxu0 %v1887
        %2125 = vmatpush1.bf16.msra.mxu0 %v1886
        %2126 = vmatprep.subr.bf16.mxu0 %v1891
        %2127 = vmatpush1.bf16.msra.mxu0 %v1890
        %2128 = vmatprep.subr.bf16.mxu0 %v1895
        %2129 = vmatpush1.bf16.msra.mxu0 %v1894
        %2130 = vmatprep.subr.bf16.mxu0 %v1899
        %2131 = vmatpush1.bf16.msra.mxu0 %v1898
        %2132 = vmatprep.subr.bf16.mxu0 %v1903
        %2133 = vmatpush1.bf16.msra.mxu0 %v1902
        %2134 = vmatprep.subr.bf16.mxu0 %v1907
        %2135 = vmatpush1.bf16.msra.mxu0 %v1906
        %2136 = vmatprep.subr.bf16.mxu0 %v1911
        %2137 = vmatpush1.bf16.msra.mxu0 %v1910
        %2138 = vmatprep.mubr.bf16.mxu0 %v1459
        %2139 = vmatmul.mubr.bf16.gmra.mrb[0].mxu0 %v1458
        %v2140 = vpop.f32.mrb[0].mxu0
        %v2141 = vadd.f32 %v1435, %v2140
        %v2142 = vpop.f32.mrb[0].mxu0
        %v2143 = vadd.f32 %v1439, %v2142
        %v2144 = vpop.f32.mrb[0].mxu0
        %v2145 = vpop.f32.mrb[0].mxu0
        %2146 = vdwg.mxu0
        %2147 = vmatprep.subr.bf16.mxu0 %v1915
        %2148 = vmatpush1.bf16.msra.mxu0 %v1914
        %2149 = vmatprep.subr.bf16.mxu0 %v1919
        %2150 = vmatpush1.bf16.msra.mxu0 %v1918
        %2151 = vmatprep.subr.bf16.mxu0 %v1923
        %2152 = vmatpush1.bf16.msra.mxu0 %v1922
        %2153 = vmatprep.subr.bf16.mxu0 %v1927
        %2154 = vmatpush1.bf16.msra.mxu0 %v1926
        %2155 = vmatprep.subr.bf16.mxu0 %v1931
        %2156 = vmatpush1.bf16.msra.mxu0 %v1930
        %2157 = vmatprep.subr.bf16.mxu0 %v1935
        %2158 = vmatpush1.bf16.msra.mxu0 %v1934
        %2159 = vmatprep.subr.bf16.mxu0 %v1939
        %2160 = vmatpush1.bf16.msra.mxu0 %v1938
        %2161 = vmatprep.subr.bf16.mxu0 %v1943
        %2162 = vmatpush1.bf16.msra.mxu0 %v1942
        %2163 = vmatprep.subr.bf16.mxu0 %v1947
        %2164 = vmatpush1.bf16.msra.mxu0 %v1946
        %2165 = vmatprep.subr.bf16.mxu0 %v1951
        %2166 = vmatpush1.bf16.msra.mxu0 %v1950
        %2167 = vmatprep.subr.bf16.mxu0 %v1955
        %2168 = vmatpush1.bf16.msra.mxu0 %v1954
        %2169 = vmatprep.subr.bf16.mxu0 %v1959
        %2170 = vmatpush1.bf16.msra.mxu0 %v1958
        %2171 = vmatprep.subr.bf16.mxu0 %v1963
        %2172 = vmatpush1.bf16.msra.mxu0 %v1962
        %2173 = vmatprep.subr.bf16.mxu0 %v1967
        %2174 = vmatpush1.bf16.msra.mxu0 %v1966
        %2175 = vmatprep.subr.bf16.mxu0 %v1971
        %2176 = vmatpush1.bf16.msra.mxu0 %v1970
        %2177 = vmatprep.subr.bf16.mxu0 %v1975
        %2178 = vmatpush1.bf16.msra.mxu0 %v1974
        %2179 = vmatprep.mubr.bf16.mxu0 %v1461
        %2180 = vmatmul.mubr.bf16.gmra.mrb[0].mxu0 %v1460
        %v2181 = vpop.f32.mrb[0].mxu0
        %v2182 = vadd.f32 %v2141, %v2181
        %v2183 = vpop.f32.mrb[0].mxu0
        %v2184 = vadd.f32 %v2143, %v2183
        %v2185 = vpop.f32.mrb[0].mxu0
        %v2186 = vpop.f32.mrb[0].mxu0
        %2187 = vdwg.mxu0
        %2188 = vmatprep.subr.bf16.mxu0 %v1853
        %2189 = vmatpush1.bf16.msra.mxu0 %v1852
        %2190 = vmatprep.subr.bf16.mxu0 %v1857
        %2191 = vmatpush1.bf16.msra.mxu0 %v1856
        %2192 = vmatprep.subr.bf16.mxu0 %v1861
        %2193 = vmatpush1.bf16.msra.mxu0 %v1860
        %2194 = vmatprep.subr.bf16.mxu0 %v1865
        %2195 = vmatpush1.bf16.msra.mxu0 %v1864
        %2196 = vmatprep.subr.bf16.mxu0 %v1869
        %2197 = vmatpush1.bf16.msra.mxu0 %v1868
        %2198 = vmatprep.subr.bf16.mxu0 %v1873
        %2199 = vmatpush1.bf16.msra.mxu0 %v1872
        %2200 = vmatprep.subr.bf16.mxu0 %v1877
        %2201 = vmatpush1.bf16.msra.mxu0 %v1876
        %2202 = vmatprep.subr.bf16.mxu0 %v1881
        %2203 = vmatpush1.bf16.msra.mxu0 %v1880
        %2204 = vmatprep.subr.bf16.mxu0 %v1885
        %2205 = vmatpush1.bf16.msra.mxu0 %v1884
        %2206 = vmatprep.subr.bf16.mxu0 %v1889
        %2207 = vmatpush1.bf16.msra.mxu0 %v1888
        %2208 = vmatprep.subr.bf16.mxu0 %v1893
        %2209 = vmatpush1.bf16.msra.mxu0 %v1892
        %2210 = vmatprep.subr.bf16.mxu0 %v1897
        %2211 = vmatpush1.bf16.msra.mxu0 %v1896
        %2212 = vmatprep.subr.bf16.mxu0 %v1901
        %2213 = vmatpush1.bf16.msra.mxu0 %v1900
        %2214 = vmatprep.subr.bf16.mxu0 %v1905
        %2215 = vmatpush1.bf16.msra.mxu0 %v1904
        %2216 = vmatprep.subr.bf16.mxu0 %v1909
        %2217 = vmatpush1.bf16.msra.mxu0 %v1908
        %2218 = vmatprep.subr.bf16.mxu0 %v1913
        %2219 = vmatpush1.bf16.msra.mxu0 %v1912
        %2220 = vmatprep.mubr.bf16.mxu0 %v1459
        %2221 = vmatmul.mubr.bf16.gmra.mrb[0].mxu0 %v1458
        %v2222 = vpop.f32.mrb[0].mxu0
        %v2223 = vadd.f32 %v1443, %v2222
        %v2224 = vpop.f32.mrb[0].mxu0
        %v2225 = vadd.f32 %v1447, %v2224
        %v2226 = vpop.f32.mrb[0].mxu0
        %v2227 = vpop.f32.mrb[0].mxu0
        %2228 = vdwg.mxu0
        %2229 = vmatprep.subr.bf16.mxu0 %v1917
        %2230 = vmatpush1.bf16.msra.mxu0 %v1916
        %2231 = vmatprep.subr.bf16.mxu0 %v1921
        %2232 = vmatpush1.bf16.msra.mxu0 %v1920
        %2233 = vmatprep.subr.bf16.mxu0 %v1925
        %2234 = vmatpush1.bf16.msra.mxu0 %v1924
        %2235 = vmatprep.subr.bf16.mxu0 %v1929
        %2236 = vmatpush1.bf16.msra.mxu0 %v1928
        %2237 = vmatprep.subr.bf16.mxu0 %v1933
        %2238 = vmatpush1.bf16.msra.mxu0 %v1932
        %2239 = vmatprep.subr.bf16.mxu0 %v1937
        %2240 = vmatpush1.bf16.msra.mxu0 %v1936
        %2241 = vmatprep.subr.bf16.mxu0 %v1941
        %2242 = vmatpush1.bf16.msra.mxu0 %v1940
        %2243 = vmatprep.subr.bf16.mxu0 %v1945
        %2244 = vmatpush1.bf16.msra.mxu0 %v1944
        %2245 = vmatprep.subr.bf16.mxu0 %v1949
        %2246 = vmatpush1.bf16.msra.mxu0 %v1948
        %2247 = vmatprep.subr.bf16.mxu0 %v1953
        %2248 = vmatpush1.bf16.msra.mxu0 %v1952
        %2249 = vmatprep.subr.bf16.mxu0 %v1957
        %2250 = vmatpush1.bf16.msra.mxu0 %v1956
        %2251 = vmatprep.subr.bf16.mxu0 %v1961
        %2252 = vmatpush1.bf16.msra.mxu0 %v1960
        %2253 = vmatprep.subr.bf16.mxu0 %v1965
        %2254 = vmatpush1.bf16.msra.mxu0 %v1964
        %2255 = vmatprep.subr.bf16.mxu0 %v1969
        %2256 = vmatpush1.bf16.msra.mxu0 %v1968
        %2257 = vmatprep.subr.bf16.mxu0 %v1973
        %2258 = vmatpush1.bf16.msra.mxu0 %v1972
        %2259 = vmatprep.subr.bf16.mxu0 %v1977
        %2260 = vmatpush1.bf16.msra.mxu0 %v1976
        %2261 = vmatprep.mubr.bf16.mxu0 %v1461
        %2262 = vmatmul.mubr.bf16.gmra.mrb[0].mxu0 %v1460
        %v2263 = vpop.f32.mrb[0].mxu0
        %v2264 = vadd.f32 %v2223, %v2263
        %v2265 = vpop.f32.mrb[0].mxu0
        %v2266 = vadd.f32 %v2225, %v2265
        %v2267 = vpop.f32.mrb[0].mxu0
        %v2268 = vpop.f32.mrb[0].mxu0
        %2269 = vdwg.mxu0
        %v2270 = vpack.c.bf16 %v2182, %v2182
        %v2271 = vpack.c.bf16 %v2184, %v2184
        %v2272 = vpack.c.bf16 %v2264, %v2264
        %v2273 = vpack.c.bf16 %v2266, %v2266
        %v2278 = vunpack.c.l.b16 %v2270
        %v2279 = vunpack.c.l.b16 %v2271
        %v2280 = vunpack.c.l.b16 %v2272
        %v2281 = vunpack.c.l.b16 %v2273
        %v2282 = vpack.c.b16 %v2279, %v2278
        %v2283 = vpack.c.b16 %v2281, %v2280
        %2286 = vst [vmem:[%s500] sm:$0xff] %v2282
        %2287 = vst [vmem:[%s500 + $0x8] sm:$0xff] %v2283
        %s2288 = sand.u32 %s256, 1
        %s2289 = scalar_lea.sflag [#allocation5], %s2288
        %s2290 = sand.u32 %s256, 1
        %s2291 = smul.addr %s2290, 16
        %s2292 = scalar_lea.vmem [#allocation18], %s2291
        // Predicated region
        $region97: #{tpu_custom_call.1} parent=55 // pred_check
          %p2293 = pneg %p266
        $region98: #{tpu_custom_call.1} parent=55 // pred_check_branch
          %2295 = sbr.rel (%p2293) target = $region100
        $region99: #{tpu_custom_call.1} parent=55 // pred_region
          %s2296 = smul.u32 4, %s35
          %s2298 = ssub.s32 256, 256
          %2299 = vsyncadd %s2289, %s2298
          %s2300 = smul.addr %s34, 24
          %s2301 = sadd.s32 %s2296, %s2300
          %s2302 = smul.addr %s2301, 64
          %s2303 = scalar_lea.hbm %s9, %s2302
          %s2305 = sshll.u32 %s2292, 4
          %s2306 = int_to_ptr.vmem [resolvable:$true] %s2305
          %2308 = dma.vmem_to_hbm [thread:$0]  %s2306, 256, %s2303, %s2289
        $region100: #{tpu_custom_call.1} parent=55 // pred_fallthru
          _
      $region56: #{tpu_custom_call.1} parent=5 // pred_fallthru
        _
      %p2309 = scmp.le.s32.totalorder 2, %s25
      // Predicated region
      $region101: #{tpu_custom_call.1} parent=5 // pred_check
        %p2310 = pneg %p2309
      $region102: #{tpu_custom_call.1} parent=5 // pred_check_branch
        %2312 = sbr.rel (%p2310) target = $region104
      $region103: #{tpu_custom_call.1} parent=5 // pred_region
        %s2313 = ssub.s32 %s25, 2
        // Predicated region
        $region105: #{tpu_custom_call.1} parent=103 // pred_check
          %p2314 = pneg %p272
        $region106: #{tpu_custom_call.1} parent=103 // pred_check_branch
          %2316 = sbr.rel (%p2314) target = $region108
        $region107: #{tpu_custom_call.1} parent=103 // pred_region
          %s2317 = sand.u32 %s257, 1
          %s2318 = scalar_lea.sflag [#allocation5], %s2317
          %s2319 = sand.u32 %s257, 1
          %s2320 = smul.addr %s2319, 16
          %s2321 = scalar_lea.vmem [#allocation18], %s2320
          %2322 = dma.done %s2318, 256
        $region108: #{tpu_custom_call.1} parent=103 // pred_fallthru
          _
      $region104: #{tpu_custom_call.1} parent=5 // pred_fallthru
        _
    $region6: #{tpu_custom_call.1} parent=1 // loop_footer
      %s29 = sadd.s32 1, %s25
    $region7: #{tpu_custom_call.1} parent=1 // loop_footer_branch
      %24 = sbr.rel target = $region3
    $region8: #{tpu_custom_call.1} parent=1 // loop_exit
      _
    %2323 = vsyncpa [#allocation4], 1
    %s2324 = scalar_lea.sflag [#allocation4], 1
    %2325 = vsyncpa %s2324, 1
    %2326 = vsyncpa [#allocation7], 1
    %2327 = vsyncpa [#allocation10], 1
    %2328 = vsyncpa [#allocation13], 1
    %2329 = vsyncpa [#allocation16], 1
    %s2330 = scalar_lea.sflag [#allocation16], 1
    %2331 = vsyncpa %s2330, 1
    %2332 = vsyncpa [#allocation5], 1
    %s2333 = scalar_lea.sflag [#allocation5], 1
    %2334 = vsyncpa %s2333, 1

</llo_original>
